<compile_context>
chip_gen: v5e
topology: v5e:2x2
jax: 0.10.0
libtpu: 0.0.40
codegen_flags: <defaults>
</compile_context>

<pallas_src>
import functools
import math

import jax
import jax.numpy as jnp
from jax.experimental import pallas as pl
from jax.experimental.pallas import tpu as pltpu


def _confusion_kernel(x1_ref, kv_ref, qmask_ref, kmask_ref,
                      wa_ref, wb_ref, bf_ref,
                      attn_ref, pooled_ref):
    """One grid step processes G batch rows.

    x1_ref    : (bs, L, E) bf16  un-replicated queries (same block every step)
    kv_ref    : (G, L, E)  bf16  key == value rows for this group
    qmask_ref : (G, L, 1)  f32   query-position validity (1.0 / 0.0)
    kmask_ref : (G, 1, L)  f32   key-position validity
    wa_ref    : (E, E)     bf16  fusion weight acting on (q - attended)
    wb_ref    : (E, E)     bf16  fusion weight acting on (q * attended)
    bf_ref    : (1, E)     f32   fusion bias
    attn_ref  : (G, L, L)  bf16  softmax attention weights            (out)
    pooled_ref: (G, 2, E)  f32   [:,0]=mean, [:,1]=max over seq       (out)
    """
    bs, L, E = x1_ref.shape
    G = kv_ref.shape[0]
    reps = G // bs

    x1r = x1_ref[...]                                   # (bs, L, E) bf16
    # torch's x1.repeat(1,4,1,1).view(...) collapses to q[j] = x1_r[j % bs]
    # for every group (G is a multiple of bs) -> replicate in VMEM, not HBM.
    # With G == bs (reps == 1) the copy disappears entirely.
    q = x1r if reps == 1 else jnp.concatenate([x1r] * reps, axis=0)   # (G, L, E)
    kv = kv_ref[...]                                    # (G, L, E) bf16

    # scores[g, i, j] = <q[g,i], k[g,j]> / sqrt(E)    (batched MXU matmul)
    scores = jax.lax.dot_general(
        q, kv, (((2,), (2,)), ((0,), (0,))),
        preferred_element_type=jnp.float32) * (1.0 / math.sqrt(E))    # (G, L, L)

    # masked_fill(mask == 0, -1e9) without materializing the (G,L,L) mask product.
    scores = jnp.where(qmask_ref[...] == 0.0, -1e9, scores)
    scores = jnp.where(kmask_ref[...] == 0.0, -1e9, scores)

    # softmax over last axis (F.softmax semantics; fully-masked rows -> uniform)
    m = jnp.max(scores, axis=-1, keepdims=True)
    ex = jnp.exp(scores - m)
    denom = jnp.sum(ex, axis=-1, keepdims=True)
    p = ex * pl.reciprocal(denom, approx=True)          # (G, L, L) f32

    attn_ref[...] = p.astype(attn_ref.dtype)            # bf16 writeback
    # TODO(synk): attention-prob dropout (train mode) not implemented.

    attended = jax.lax.dot_general(
        p.astype(jnp.bfloat16), kv, (((2,), (1,)), ((0,), (0,))),
        preferred_element_type=jnp.float32)             # (G, L, E) f32
    att = attended.astype(jnp.bfloat16)

    # fusion Linear with pre-split weight: no lane-axis concat, M = G*L rows.
    diff = (q - att).reshape(G * L, E)                  # bf16
    prod = (q * att).reshape(G * L, E)                  # bf16
    fused = (jnp.dot(diff, wa_ref[...], preferred_element_type=jnp.float32)
             + jnp.dot(prod, wb_ref[...], preferred_element_type=jnp.float32)
             + bf_ref[...])
    fused = jnp.maximum(fused, 0.0).reshape(G, L, E)    # f32

    mean = jnp.mean(fused, axis=1, keepdims=True)       # (G, 1, E)
    mx = jnp.max(fused, axis=1, keepdims=True)          # (G, 1, E)
    pooled_ref[...] = jnp.concatenate([mean, mx], axis=1)


def init_params(key, encode_size):
    """Deterministic init matching the nn.Linear shapes (fusion weight pre-split, bf16)."""
    E = encode_size
    k1, k2, k3, k4 = jax.random.split(key, 4)
    lim_f = 1.0 / math.sqrt(2 * E)
    wf = jax.random.uniform(k1, (E, 2 * E), jnp.float32, -lim_f, lim_f)
    bf = jax.random.uniform(k2, (E,), jnp.float32, -lim_f, lim_f)
    lim_o = 1.0 / math.sqrt(8 * E)
    wo = jax.random.uniform(k3, (2 * E, 8 * E), jnp.float32, -lim_o, lim_o)
    bo = jax.random.uniform(k4, (2 * E,), jnp.float32, -lim_o, lim_o)
    wf_t = wf.T                                             # [2E, E]
    return {
        "fusion_wa_t": wf_t[:E].astype(jnp.bfloat16),       # [E, E] on (q - attended)
        "fusion_wb_t": wf_t[E:].astype(jnp.bfloat16),       # [E, E] on (q * attended)
        "fusion_b": bf.reshape(1, E),                       # [1, E] f32 (added to f32 acc)
        "out_w_t": wo.T,                                    # [8E, 2E]
        "out_b": bo.reshape(1, 2 * E),                      # [1, 2E]
    }


def _build_masks(x1_len, x2_len, B4, seq_length, L):
    """Reproduces the torch repeat/view mask ordering (tiny arrays, built in XLA)."""
    S = seq_length
    x1_len_flat = jnp.tile(x1_len.reshape(-1), 4)        # [4*B4]
    x2_len_flat = x2_len.reshape(-1)                     # [B4*D]
    ar = jnp.arange(S, dtype=x1_len.dtype)
    qm = (ar[None, :] < x1_len_flat[:, None]).astype(jnp.float32).reshape(B4, L)
    km = (ar[None, :] < x2_len_flat[:, None]).astype(jnp.float32).reshape(B4, L)
    return qm[:, :, None], km[:, None, :]                # (B4,L,1), (B4,1,L)


def _default_num_grid_steps():
    # 1 step on single-TensorCore parts (v5e/v6e): grid parallelism buys nothing
    # and extra steps are pure per-step overhead at these sizes.
    # 2 steps on v7x (one per TensorCore, megacore sharding).
    try:
        kind = jax.devices()[0].device_kind.lower()
    except Exception:  # pragma: no cover - defensive
        return 1
    return 2 if "7" in kind else 1


def confusion_forward(params, x1, x2, x1_len, x2_len, *,
                      batch_size, docset_size, seq_length, encode_size,
                      num_grid_steps=None):
    # Runtime shapes (required by the module's view arithmetic):
    #   x1: [4*batch_size, S, E]   x2: [4*batch_size, 4, S, E]
    #   x1_len: [4*batch_size]     x2_len: [4*batch_size, 4]
    B4 = x1.shape[0]
    bs, D, S, E = batch_size, docset_size, seq_length, encode_size
    L = D * S
    assert B4 == 4 * bs and D == 4, "module arithmetic requires leading dim 4*bs, docset=4"

    # Free metadata reshapes + bf16 ingress (in production, feed bf16 activations
    # directly from the upstream encoder so no extra cast pass is needed).
    x1_r = x1.reshape(bs, L, E).astype(jnp.bfloat16)     # x1_rep[b] == x1_r[b % bs]
    x2_r = x2.reshape(B4, L, E).astype(jnp.bfloat16)
    q_mask, k_mask = _build_masks(x1_len, x2_len, B4, S, L)

    NG = _default_num_grid_steps() if num_grid_steps is None else int(num_grid_steps)
    if NG < 1 or B4 % NG != 0 or (B4 // NG) % bs != 0:
        NG = 1                                            # safe fallback
    G = B4 // NG                                          # batch rows per grid step
    assert G % bs == 0, "q replication q[j]=x1_r[j%bs] requires G to be a multiple of bs"

    attn, pooled = pl.pallas_call(
        _confusion_kernel,
        out_shape=(
            jax.ShapeDtypeStruct((B4, L, L), jnp.bfloat16),
            jax.ShapeDtypeStruct((B4, 2, E), jnp.float32),
        ),
        grid_spec=pltpu.PrefetchScalarGridSpec(
            num_scalar_prefetch=0,
            grid=(NG,),
            in_specs=[
                pl.BlockSpec((bs, L, E), lambda g: (0, 0, 0)),   # x1_r (resident)
                pl.BlockSpec((G, L, E), lambda g: (g, 0, 0)),    # x2_r
                pl.BlockSpec((G, L, 1), lambda g: (g, 0, 0)),    # q_mask
                pl.BlockSpec((G, 1, L), lambda g: (g, 0, 0)),    # k_mask
                pl.BlockSpec((E, E), lambda g: (0, 0)),          # fusion_wa_t (bf16)
                pl.BlockSpec((E, E), lambda g: (0, 0)),          # fusion_wb_t (bf16)
                pl.BlockSpec((1, E), lambda g: (0, 0)),          # fusion_b (f32)
            ],
            out_specs=[
                pl.BlockSpec((G, L, L), lambda g: (g, 0, 0)),    # attn (bf16)
                pl.BlockSpec((G, 2, E), lambda g: (g, 0, 0)),    # pooled (mean/max)
            ],
        ),
        compiler_params=pltpu.CompilerParams(
            dimension_semantics=("parallel",)),
        # NOTE: set vmem_limit_bytes here once L/E are non-toy (the G*L*L attn
        # block is what pressures v7x's 64 MiB physical VMEM first).
    )(x1_r, x2_r, q_mask, k_mask,
      params["fusion_wa_t"], params["fusion_wb_t"], params["fusion_b"])

    x1_mean = pooled[:, 0, :]            # [B4, E]
    x1_max = pooled[:, 1, :]             # [B4, E]
    pooled_vec = jnp.concatenate(
        [x1_mean.reshape(bs, -1), x1_max.reshape(bs, -1)], axis=-1)  # [bs, 8E]

    # Output Linear + ReLU: microseconds of work -> plain jnp (XLA fuses it).
    out = jnp.maximum(pooled_vec @ params["out_w_t"] + params["out_b"], 0.0)
    return out, attn


def reference_forward(params, x1, x2, x1_len, x2_len, *,
                      batch_size, docset_size, seq_length, encode_size):
    """Pure-JAX f32 reference (matches the torch math, no Pallas)."""
    B4 = x1.shape[0]
    S, E, D = seq_length, encode_size, docset_size
    L = D * S
    x1_rep = jnp.tile(x1, (4, 1, 1)).reshape(B4, D, S, E).reshape(B4, L, E)
    x2_r = x2.reshape(B4, L, E)
    q_mask, k_mask = _build_masks(x1_len, x2_len, B4, S, L)
    mask = q_mask * k_mask
    scores = jnp.einsum("bqe,bke->bqk", x1_rep, x2_r) / math.sqrt(E)
    scores = jnp.where(mask == 0.0, -1e9, scores)
    attn = jax.nn.softmax(scores, axis=-1)
    att = jnp.einsum("bqk,bke->bqe", attn, x2_r)
    cat = jnp.concatenate([x1_rep - att, x1_rep * att], axis=-1)
    wf_t = jnp.concatenate([params["fusion_wa_t"], params["fusion_wb_t"]],
                           axis=0).astype(jnp.float32)
    fused = jnp.maximum(cat @ wf_t + params["fusion_b"], 0.0)
    pooled = jnp.concatenate(
        [fused.mean(axis=1).reshape(batch_size, -1),
         fused.max(axis=1).reshape(batch_size, -1)], axis=-1)
    out = jnp.maximum(pooled @ params["out_w_t"] + params["out_b"], 0.0)
    return out, attn


if __name__ == "__main__":
    bs, ds, S, E = 2, 4, 8, 32          # batch_size, docset_size, seq_length, encode_size
    B4 = 4 * bs                          # runtime leading dim of x1 / x2
    L = ds * S

    key = jax.random.PRNGKey(0)
    kp, kx1, kx2, kl1, kl2 = jax.random.split(key, 5)
    params = init_params(kp, E)
    x1 = jax.random.normal(kx1, (B4, S, E), jnp.float32)
    x2 = jax.random.normal(kx2, (B4, ds, S, E), jnp.float32)
    x1_len = jax.random.randint(kl1, (B4,), 1, S + 1).astype(jnp.int32)
    x2_len = jax.random.randint(kl2, (B4, ds), 1, S + 1).astype(jnp.int32)

    fwd = jax.jit(functools.partial(
        confusion_forward,
        batch_size=bs, docset_size=ds, seq_length=S, encode_size=E))
    out, attn = fwd(params, x1, x2, x1_len, x2_len)
    jax.block_until_ready((out, attn))

    ref_out, ref_attn = reference_forward(
        params, x1, x2, x1_len, x2_len,
        batch_size=bs, docset_size=ds, seq_length=S, encode_size=E)

    assert out.shape == (bs, 2 * E), out.shape
    assert attn.shape == (B4, L, L), attn.shape
    assert bool(jnp.allclose(out, ref_out, atol=2e-2, rtol=2e-2))
    assert bool(jnp.allclose(attn.astype(jnp.float32), ref_attn, atol=2e-2, rtol=2e-2))
    print("KERNEL_OK")
</pallas_src>

<mosaic_0001>
module attributes {stable_mosaic.version = 11 : i64} {
  func.func @_confusion_kernel(%arg0: i32, %arg1: memref<2x32x32xbf16, #tpu.memory_space<vmem>>, %arg2: memref<8x32x32xbf16, #tpu.memory_space<vmem>>, %arg3: memref<8x32x1xf32, #tpu.memory_space<vmem>>, %arg4: memref<8x1x32xf32, #tpu.memory_space<vmem>>, %arg5: memref<32x32xbf16, #tpu.memory_space<vmem>>, %arg6: memref<32x32xbf16, #tpu.memory_space<vmem>>, %arg7: memref<1x32xf32, #tpu.memory_space<vmem>>, %arg8: memref<8x32x32xbf16, #tpu.memory_space<vmem>>, %arg9: memref<8x2x32xf32, #tpu.memory_space<vmem>>) attributes {dimension_semantics = [#tpu.dimension_semantics<parallel>], iteration_bounds = array<i64: 1>, scalar_prefetch = 0 : i64, scratch_operands = 0 : i64, tpu.core_type = #tpu.core_type<tc>, window_params = [{pipeline_mode = #tpu.pipeline_mode<synchronous>, transform_indices = @transform_0, window_bounds = array<i64: 2, 32, 32>}, {transform_indices = @transform_1, window_bounds = array<i64: 8, 32, 32>}, {transform_indices = @transform_2, window_bounds = array<i64: 8, 32, 1>}, {transform_indices = @transform_3, window_bounds = array<i64: 8, 1, 32>}, {pipeline_mode = #tpu.pipeline_mode<synchronous>, transform_indices = @transform_4, window_bounds = array<i64: 32, 32>}, {pipeline_mode = #tpu.pipeline_mode<synchronous>, transform_indices = @transform_5, window_bounds = array<i64: 32, 32>}, {pipeline_mode = #tpu.pipeline_mode<synchronous>, transform_indices = @transform_6, window_bounds = array<i64: 1, 32>}, {transform_indices = @transform_7, window_bounds = array<i64: 8, 32, 32>}, {transform_indices = @transform_8, window_bounds = array<i64: 8, 2, 32>}]} {
    %c0 = arith.constant 0 : index
    %c0_0 = arith.constant 0 : index
    %c0_1 = arith.constant 0 : index
    %0 = vector.load %arg1[%c0, %c0_0, %c0_1] : memref<2x32x32xbf16, #tpu.memory_space<vmem>>, vector<2x32x32xbf16>
    %1 = tpu.concatenate %0, %0, %0, %0 in 0 : vector<2x32x32xbf16>, vector<2x32x32xbf16>, vector<2x32x32xbf16>, vector<2x32x32xbf16> -> vector<8x32x32xbf16>
    %c0_2 = arith.constant 0 : index
    %c0_3 = arith.constant 0 : index
    %c0_4 = arith.constant 0 : index
    %2 = vector.load %arg2[%c0_2, %c0_3, %c0_4] : memref<8x32x32xbf16, #tpu.memory_space<vmem>>, vector<8x32x32xbf16>
    %cst = arith.constant dense<0.000000e+00> : vector<8x32x32xf32>
    %3 = tpu.matmul %1, %2, %cst {dimension_numbers = #tpu.dot_dimension_numbers<[2], [2], [1], [1], [0, 0, 0, 1, 1, 1], [0], [0]>} : vector<8x32x32xbf16>, vector<8x32x32xbf16>, vector<8x32x32xf32> -> vector<8x32x32xf32>
    %cst_5 = arith.constant 0.176776692 : f32
    %4 = vector.broadcast %cst_5 : f32 to vector<8x32x32xf32>
    %5 = arith.mulf %3, %4 : vector<8x32x32xf32>
    %c0_6 = arith.constant 0 : index
    %c0_7 = arith.constant 0 : index
    %c0_8 = arith.constant 0 : index
    %6 = vector.load %arg3[%c0_6, %c0_7, %c0_8] : memref<8x32x1xf32, #tpu.memory_space<vmem>>, vector<8x32x1xf32>
    %cst_9 = arith.constant 0.000000e+00 : f32
    %7 = vector.broadcast %cst_9 : f32 to vector<8x32x1xf32>
    %8 = arith.cmpf oeq, %6, %7 : vector<8x32x1xf32>
    %cst_10 = arith.constant -1.000000e+09 : f32
    %9 = vector.shape_cast %8 : vector<8x32x1xi1> to vector<8x32x1xi1>
    %10 = vector.broadcast %9 : vector<8x32x1xi1> to vector<8x32x32xi1>
    %11 = vector.broadcast %cst_10 : f32 to vector<8x32x32xf32>
    %12 = arith.select %10, %11, %5 : vector<8x32x32xi1>, vector<8x32x32xf32>
    %c0_11 = arith.constant 0 : index
    %c0_12 = arith.constant 0 : index
    %c0_13 = arith.constant 0 : index
    %13 = vector.load %arg4[%c0_11, %c0_12, %c0_13] : memref<8x1x32xf32, #tpu.memory_space<vmem>>, vector<8x1x32xf32>
    %cst_14 = arith.constant 0.000000e+00 : f32
    %14 = vector.broadcast %cst_14 : f32 to vector<8x1x32xf32>
    %15 = arith.cmpf oeq, %13, %14 : vector<8x1x32xf32>
    %cst_15 = arith.constant -1.000000e+09 : f32
    %16 = vector.shape_cast %15 : vector<8x1x32xi1> to vector<8x1x32xi1>
    %17 = vector.broadcast %16 : vector<8x1x32xi1> to vector<8x32x32xi1>
    %18 = vector.broadcast %cst_15 : f32 to vector<8x32x32xf32>
    %19 = arith.select %17, %18, %12 : vector<8x32x32xi1>, vector<8x32x32xf32>
    %cst_16 = arith.constant dense<0xFF800000> : vector<8x32xf32>
    %20 = vector.multi_reduction <maximumf>, %19, %cst_16 [2] : vector<8x32x32xf32> to vector<8x32xf32>
    %21 = vector.shape_cast %20 : vector<8x32xf32> to vector<8x32x1xf32>
    %22 = vector.broadcast %21 : vector<8x32x1xf32> to vector<8x32x32xf32>
    %23 = arith.subf %19, %22 : vector<8x32x32xf32>
    %24 = math.exp %23 : vector<8x32x32xf32>
    %cst_17 = arith.constant dense<0.000000e+00> : vector<8x32xf32>
    %25 = vector.multi_reduction <add>, %24, %cst_17 [2] : vector<8x32x32xf32> to vector<8x32xf32>
    %26 = vector.shape_cast %25 : vector<8x32xf32> to vector<8x32x1xf32>
    %27 = tpu.reciprocal %26 {approx = true} : vector<8x32x1xf32> -> vector<8x32x1xf32>
    %28 = vector.broadcast %27 : vector<8x32x1xf32> to vector<8x32x32xf32>
    %29 = arith.mulf %24, %28 : vector<8x32x32xf32>
    %30 = arith.truncf %29 : vector<8x32x32xf32> to vector<8x32x32xbf16>
    %c0_18 = arith.constant 0 : index
    %c0_19 = arith.constant 0 : index
    %c0_20 = arith.constant 0 : index
    %31 = vector.load %arg8[%c0_18, %c0_19, %c0_20] : memref<8x32x32xbf16, #tpu.memory_space<vmem>>, vector<8x32x32xbf16>
    tpu.vector_store %arg8[%c0_18, %c0_19, %c0_20], %30 {strides = array<i32>} : memref<8x32x32xbf16, #tpu.memory_space<vmem>>, vector<8x32x32xbf16>,
    %32 = arith.truncf %29 : vector<8x32x32xf32> to vector<8x32x32xbf16>
    %cst_21 = arith.constant dense<0.000000e+00> : vector<8x32x32xf32>
    %33 = tpu.matmul %32, %2, %cst_21 {dimension_numbers = #tpu.dot_dimension_numbers<[2], [1], [1], [2], [0, 0, 0, 1, 1, 2], [0], [0]>} : vector<8x32x32xbf16>, vector<8x32x32xbf16>, vector<8x32x32xf32> -> vector<8x32x32xf32>
    %34 = arith.truncf %33 : vector<8x32x32xf32> to vector<8x32x32xbf16>
    %35 = arith.subf %1, %34 : vector<8x32x32xbf16>
    %36 = vector.shape_cast %35 : vector<8x32x32xbf16> to vector<256x32xbf16>
    %37 = arith.mulf %1, %34 : vector<8x32x32xbf16>
    %38 = vector.shape_cast %37 : vector<8x32x32xbf16> to vector<256x32xbf16>
    %c0_22 = arith.constant 0 : index
    %c0_23 = arith.constant 0 : index
    %39 = vector.load %arg5[%c0_22, %c0_23] : memref<32x32xbf16, #tpu.memory_space<vmem>>, vector<32x32xbf16>
    %cst_24 = arith.constant dense<0.000000e+00> : vector<256x32xf32>
    %40 = tpu.matmul %36, %39, %cst_24 {dimension_numbers = #tpu.dot_dimension_numbers<[1], [0], [0], [1], [0, 0, 1, 1], [], []>} : vector<256x32xbf16>, vector<32x32xbf16>, vector<256x32xf32> -> vector<256x32xf32>
    %c0_25 = arith.constant 0 : index
    %c0_26 = arith.constant 0 : index
    %41 = vector.load %arg6[%c0_25, %c0_26] : memref<32x32xbf16, #tpu.memory_space<vmem>>, vector<32x32xbf16>
    %cst_27 = arith.constant dense<0.000000e+00> : vector<256x32xf32>
    %42 = tpu.matmul %38, %41, %cst_27 {dimension_numbers = #tpu.dot_dimension_numbers<[1], [0], [0], [1], [0, 0, 1, 1], [], []>} : vector<256x32xbf16>, vector<32x32xbf16>, vector<256x32xf32> -> vector<256x32xf32>
    %43 = arith.addf %40, %42 : vector<256x32xf32>
    %c0_28 = arith.constant 0 : index
    %c0_29 = arith.constant 0 : index
    %44 = vector.load %arg7[%c0_28, %c0_29] : memref<1x32xf32, #tpu.memory_space<vmem>>, vector<1x32xf32>
    %45 = vector.broadcast %44 : vector<1x32xf32> to vector<256x32xf32>
    %46 = arith.addf %43, %45 : vector<256x32xf32>
    %cst_30 = arith.constant 0.000000e+00 : f32
    %47 = vector.broadcast %cst_30 : f32 to vector<256x32xf32>
    %48 = arith.maximumf %46, %47 : vector<256x32xf32>
    %49 = vector.shape_cast %48 : vector<256x32xf32> to vector<8x32x32xf32>
    %cst_31 = arith.constant dense<0.000000e+00> : vector<8x32xf32>
    %50 = vector.multi_reduction <add>, %49, %cst_31 [1] : vector<8x32x32xf32> to vector<8x32xf32>
    %51 = vector.shape_cast %50 : vector<8x32xf32> to vector<8x1x32xf32>
    %cst_32 = arith.constant 3.200000e+01 : f32
    %52 = vector.broadcast %cst_32 : f32 to vector<8x1x32xf32>
    %53 = arith.divf %51, %52 : vector<8x1x32xf32>
    %cst_33 = arith.constant dense<0xFF800000> : vector<8x32xf32>
    %54 = vector.multi_reduction <maximumf>, %49, %cst_33 [1] : vector<8x32x32xf32> to vector<8x32xf32>
    %55 = vector.shape_cast %54 : vector<8x32xf32> to vector<8x1x32xf32>
    %56 = tpu.concatenate %53, %55 in 1 : vector<8x1x32xf32>, vector<8x1x32xf32> -> vector<8x2x32xf32>
    %c0_34 = arith.constant 0 : index
    %c0_35 = arith.constant 0 : index
    %c0_36 = arith.constant 0 : index
    %57 = vector.load %arg9[%c0_34, %c0_35, %c0_36] : memref<8x2x32xf32, #tpu.memory_space<vmem>>, vector<8x2x32xf32>
    tpu.vector_store %arg9[%c0_34, %c0_35, %c0_36], %56 {strides = array<i32>} : memref<8x2x32xf32, #tpu.memory_space<vmem>>, vector<8x2x32xf32>,
    return
  }
  func.func @transform_0(%arg0: i32) -> (i32, i32, i32) {
    %c0_i32 = arith.constant 0 : i32
    %c0_i32_0 = arith.constant 0 : i32
    %c0_i32_1 = arith.constant 0 : i32
    %c0_i32_2 = arith.constant 0 : i32
    return %c0_i32, %c0_i32_0, %c0_i32_1 : i32, i32, i32
  }
  func.func @transform_1(%arg0: i32) -> (i32, i32, i32) {
    %c0_i32 = arith.constant 0 : i32
    %c0_i32_0 = arith.constant 0 : i32
    %c0_i32_1 = arith.constant 0 : i32
    return %arg0, %c0_i32, %c0_i32_0 : i32, i32, i32
  }
  func.func @transform_2(%arg0: i32) -> (i32, i32, i32) {
    %c0_i32 = arith.constant 0 : i32
    %c0_i32_0 = arith.constant 0 : i32
    %c0_i32_1 = arith.constant 0 : i32
    return %arg0, %c0_i32, %c0_i32_0 : i32, i32, i32
  }
  func.func @transform_3(%arg0: i32) -> (i32, i32, i32) {
    %c0_i32 = arith.constant 0 : i32
    %c0_i32_0 = arith.constant 0 : i32
    %c0_i32_1 = arith.constant 0 : i32
    return %arg0, %c0_i32, %c0_i32_0 : i32, i32, i32
  }
  func.func @transform_4(%arg0: i32) -> (i32, i32) {
    %c0_i32 = arith.constant 0 : i32
    %c0_i32_0 = arith.constant 0 : i32
    %c0_i32_1 = arith.constant 0 : i32
    return %c0_i32, %c0_i32_0 : i32, i32
  }
  func.func @transform_5(%arg0: i32) -> (i32, i32) {
    %c0_i32 = arith.constant 0 : i32
    %c0_i32_0 = arith.constant 0 : i32
    %c0_i32_1 = arith.constant 0 : i32
    return %c0_i32, %c0_i32_0 : i32, i32
  }
  func.func @transform_6(%arg0: i32) -> (i32, i32) {
    %c0_i32 = arith.constant 0 : i32
    %c0_i32_0 = arith.constant 0 : i32
    %c0_i32_1 = arith.constant 0 : i32
    return %c0_i32, %c0_i32_0 : i32, i32
  }
  func.func @transform_7(%arg0: i32) -> (i32, i32, i32) {
    %c0_i32 = arith.constant 0 : i32
    %c0_i32_0 = arith.constant 0 : i32
    %c0_i32_1 = arith.constant 0 : i32
    return %arg0, %c0_i32, %c0_i32_0 : i32, i32, i32
  }
  func.func @transform_8(%arg0: i32) -> (i32, i32, i32) {
    %c0_i32 = arith.constant 0 : i32
    %c0_i32_0 = arith.constant 0 : i32
    %c0_i32_1 = arith.constant 0 : i32
    return %arg0, %c0_i32, %c0_i32_0 : i32, i32, i32
  }
}

</mosaic_0001>

<llo_original>
// kernel: squeeze.2
$region0: #{squeeze.2}
  %s0 = inlined_call_operand.vmem [shape: bf16[8,32], index: 0, kind: input, shape index: {}]
  %s1 = inlined_call_operand.vmem [shape: bf16[2,128], index: 1, kind: output, shape index: {}]
  $region1: #{squeeze.2} parent=0
    #allocation0 [shape = 'u8[4096]{0}', space=vmem, size = 0x1000, scoped, tag = 'scoped mem for output reshape']
    #allocation1 [shape = 'u8[4096]{0}', space=vmem, size = 0x1000, scoped, tag = 'scoped mem for input reshape']
    %s3 = ssub.s32 256, 1
    %s4 = sshrl.u32 %s3, 1
    %s5 = sor.u32 %s3, %s4
    %s6 = sand.u32 %s5, 85
    %s7 = sshrl.u32 %s6, 1
    %s8 = sor.u32 %s6, %s7
    %s9 = sand.u32 51, %s8
    %s10 = sshrl.u32 %s9, 2
    %s11 = sor.u32 %s9, %s10
    %s12 = sand.u32 15, %s11
    %v13 = vld [vmem:[%s0] sm:%s12]
    %v14 = vunpack.c.l.bf16 %v13
    %v15 = vunpack.c.h.bf16 %v13
    %16 = vst [vmem:[#allocation1] sm:%s3] %v14
    %s17 = smov 3
    %v18 = vld [vmem:[#allocation1] ss:$4 sm:%s17]
    %vm19 = vcmask 261120
    %20 = vst.msk [vmem:[#allocation0] sm:$0x3] %vm19, %v18
    %s21 = scalar_lea.vmem [#allocation1], 3
    %s22 = smov 3
    %v23 = vld [vmem:[%s21] ss:$4 sm:%s22]
    %24 = vrot.lane.b32.xlu0 %v23, 96
    %v25 = vpop.permute.xlu0 %24
    %vm26 = vcmask 1048320
    %27 = vst.msk [vmem:[#allocation0] sm:$0x3] %vm26, %v25
    %s28 = scalar_lea.vmem [#allocation1], 2
    %s29 = smov 3
    %v30 = vld [vmem:[%s28] ss:$4 sm:%s29]
    %31 = vrot.lane.b32.xlu0 %v30, 64
    %v32 = vpop.permute.xlu0 %31
    %vm33 = vcmask 785920
    %34 = vst.msk [vmem:[#allocation0] sm:$0x3] %vm33, %v32
    %s35 = scalar_lea.vmem [#allocation1], 1
    %s36 = smov 3
    %v37 = vld [vmem:[%s35] ss:$4 sm:%s36]
    %38 = vrot.lane.b32.xlu0 %v37, 32
    %v39 = vpop.permute.xlu0 %38
    %vm40 = vcmask 523520
    %41 = vst.msk [vmem:[#allocation0] sm:$0x3] %vm40, %v39
    %s43 = ssub.s32 4, 1
    %v44 = vld [vmem:[#allocation0] sm:%s43]
    %v45 = vpack.c.bf16 0.0, %v44
    %s47 = ssub.s32 2, 1
    %48 = vst [vmem:[%s1] sm:%s47] %v45

// kernel: confusion_forward.1
$region0: #{confusion_forward.1}
  #allocation0 [shape = 'u32[]', space=smem, size = 0x4, offset = 0x4, fixed_abs, tag = 'smem constant byte address 0x4 - core index']
  #allocation1 [shape = 'u32[72,128]{1,0:T(1,128)}', space=vmem, size = 0x9000, scoped, tag = 'internal scratch']
  %s0 = inlined_call_operand.vmem [shape: bf16[2,32,32], index: 0, kind: input, shape index: {}]
  %s1 = inlined_call_operand.vmem [shape: bf16[8,32,32], index: 1, kind: input, shape index: {}]
  %s2 = inlined_call_operand.vmem [shape: f32[8,32,1], index: 2, kind: input, shape index: {}]
  %s3 = inlined_call_operand.vmem [shape: f32[8,1,32], index: 3, kind: input, shape index: {}]
  %s4 = inlined_call_operand.vmem [shape: bf16[32,32], index: 4, kind: input, shape index: {}]
  %s5 = inlined_call_operand.vmem [shape: bf16[32,32], index: 5, kind: input, shape index: {}]
  %s6 = inlined_call_operand.vmem [shape: f32[1,32], index: 6, kind: input, shape index: {}]
  %s7 = inlined_call_operand.hbm [shape: bf16[8,32,32], index: 7, kind: output, shape index: {0}]
  %s8 = inlined_call_operand.vmem [shape: f32[8,2,32], index: 8, kind: output, shape index: {1}]
  %9 = xla_tuple %s7, %s8
  %s10 = sld [smem:[#allocation0]]
  $region46: #{confusion_forward.1} parent=0
    _
  %s12 = ssub.s32 1, %s10
  %s13 = scalar_select 0, %s12, %s10
  $region1: #{confusion_forward.1} parent=0
    #allocation2 [shape = 'u8[65536]{0}', space=vmem, size = 0x10000, scoped, tag = 'output window, operand 0, single buffered']
    #allocation3 [shape = 's32[1]{0}', space=sflag, size = 0x4, scoped, tag = 'scoped memory for confusion_forward.1']
    %14 = vsyncpa [#allocation3], 0
    // Predicated region
    $region2: #{confusion_forward.1} parent=1 // pred_check
      _
    $region3: #{confusion_forward.1} parent=1 // pred_check_branch
      %16 = sbr.rel (0) target = $region5
    $region4: #{confusion_forward.1} parent=1 // pred_region
      _
    $region5: #{confusion_forward.1} parent=1 // pred_fallthru
      _
    // Predicated region
    $region6: #{confusion_forward.1} parent=1 // pred_check
      _
    $region7: #{confusion_forward.1} parent=1 // pred_check_branch
      %18 = sbr.rel (0) target = $region9
    $region8: #{confusion_forward.1} parent=1 // pred_region
      _
    $region9: #{confusion_forward.1} parent=1 // pred_fallthru
      _
    // Predicated region
    $region10: #{confusion_forward.1} parent=1 // pred_check
      _
    $region11: #{confusion_forward.1} parent=1 // pred_check_branch
      %20 = sbr.rel (0) target = $region13
    $region12: #{confusion_forward.1} parent=1 // pred_region
      _
    $region13: #{confusion_forward.1} parent=1 // pred_fallthru
      _
    // Predicated region
    $region14: #{confusion_forward.1} parent=1 // pred_check
      _
    $region15: #{confusion_forward.1} parent=1 // pred_check_branch
      %22 = sbr.rel (0) target = $region17
    $region16: #{confusion_forward.1} parent=1 // pred_region
      _
    $region17: #{confusion_forward.1} parent=1 // pred_fallthru
      _
    // Predicated region
    $region18: #{confusion_forward.1} parent=1 // pred_check
      _
    $region19: #{confusion_forward.1} parent=1 // pred_check_branch
      %24 = sbr.rel (0) target = $region21
    $region20: #{confusion_forward.1} parent=1 // pred_region
      _
    $region21: #{confusion_forward.1} parent=1 // pred_fallthru
      _
    // Predicated region
    $region22: #{confusion_forward.1} parent=1 // pred_check
      _
    $region23: #{confusion_forward.1} parent=1 // pred_check_branch
      %26 = sbr.rel (0) target = $region25
    $region24: #{confusion_forward.1} parent=1 // pred_region
      _
    $region25: #{confusion_forward.1} parent=1 // pred_fallthru
      _
    // Predicated region
    $region26: #{confusion_forward.1} parent=1 // pred_check
      _
    $region27: #{confusion_forward.1} parent=1 // pred_check_branch
      %28 = sbr.rel (0) target = $region29
    $region28: #{confusion_forward.1} parent=1 // pred_region
      _
    $region29: #{confusion_forward.1} parent=1 // pred_fallthru
      _
    %v30 = vld [vmem:[%s0] sm:$0xf]
    %v31 = vld [vmem:[%s0 + $0x4] sm:$0xf]
    %v32 = vld [vmem:[%s0 + $0x8] sm:$0xf]
    %v33 = vld [vmem:[%s0 + $0xc] sm:$0xf]
    %v34 = vld [vmem:[%s0 + $0x10] sm:$0xf]
    %v35 = vld [vmem:[%s0 + $0x14] sm:$0xf]
    %v36 = vld [vmem:[%s0 + $0x18] sm:$0xf]
    %v37 = vld [vmem:[%s0 + $0x1c] sm:$0xf]
    %v38 = vld [vmem:[%s1] sm:$0xf]
    %v39 = vld [vmem:[%s1 + $0x4] sm:$0xf]
    %v40 = vld [vmem:[%s1 + $0x8] sm:$0xf]
    %v41 = vld [vmem:[%s1 + $0xc] sm:$0xf]
    %v42 = vld [vmem:[%s1 + $0x10] sm:$0xf]
    %v43 = vld [vmem:[%s1 + $0x14] sm:$0xf]
    %v44 = vld [vmem:[%s1 + $0x18] sm:$0xf]
    %v45 = vld [vmem:[%s1 + $0x1c] sm:$0xf]
    %v46 = vld [vmem:[%s1 + $0x20] sm:$0xf]
    %v47 = vld [vmem:[%s1 + $0x24] sm:$0xf]
    %v48 = vld [vmem:[%s1 + $0x28] sm:$0xf]
    %v49 = vld [vmem:[%s1 + $0x2c] sm:$0xf]
    %v50 = vld [vmem:[%s1 + $0x30] sm:$0xf]
    %v51 = vld [vmem:[%s1 + $0x34] sm:$0xf]
    %v52 = vld [vmem:[%s1 + $0x38] sm:$0xf]
    %v53 = vld [vmem:[%s1 + $0x3c] sm:$0xf]
    %v54 = vld [vmem:[%s1 + $0x40] sm:$0xf]
    %v55 = vld [vmem:[%s1 + $0x44] sm:$0xf]
    %v56 = vld [vmem:[%s1 + $0x48] sm:$0xf]
    %v57 = vld [vmem:[%s1 + $0x4c] sm:$0xf]
    %v58 = vld [vmem:[%s1 + $0x50] sm:$0xf]
    %v59 = vld [vmem:[%s1 + $0x54] sm:$0xf]
    %v60 = vld [vmem:[%s1 + $0x58] sm:$0xf]
    %v61 = vld [vmem:[%s1 + $0x5c] sm:$0xf]
    %v62 = vld [vmem:[%s1 + $0x60] sm:$0xf]
    %v63 = vld [vmem:[%s1 + $0x64] sm:$0xf]
    %v64 = vld [vmem:[%s1 + $0x68] sm:$0xf]
    %v65 = vld [vmem:[%s1 + $0x6c] sm:$0xf]
    %v66 = vld [vmem:[%s1 + $0x70] sm:$0xf]
    %v67 = vld [vmem:[%s1 + $0x74] sm:$0xf]
    %v68 = vld [vmem:[%s1 + $0x78] sm:$0xf]
    %v69 = vld [vmem:[%s1 + $0x7c] sm:$0xf]
    %v74 = vunpack.c.l.b16 %v30
    %v75 = vunpack.c.l.b16 %v31
    %v76 = vunpack.c.l.b16 %v32
    %v77 = vunpack.c.l.b16 %v33
    %v78 = vpack.c.b16 %v75, %v74
    %v79 = vpack.c.b16 %v77, %v76
    %v84 = vunpack.c.l.b16 %v38
    %v85 = vunpack.c.l.b16 %v39
    %v86 = vunpack.c.l.b16 %v40
    %v87 = vunpack.c.l.b16 %v41
    %v88 = vpack.c.b16 %v85, %v84
    %v89 = vpack.c.b16 %v87, %v86
    %vm90 = vcmask 261120
    %v92 = vsel %vm90, %v78, 0
    %v95 = vsel %vm90, %v79, 0
    %v98 = vsel %vm90, %v88, 0
    %v101 = vsel %vm90, %v89, 0
    %103 = vmatpush.bf16.xpose.msra.mxu0 0
    %104 = vmatpush.bf16.xpose.msra.mxu0 0
    %105 = vmatpush.bf16.xpose.msra.mxu0 0
    %106 = vmatpush.bf16.xpose.msra.mxu0 0
    %107 = vmatpush.bf16.xpose.msra.mxu0 0
    %108 = vmatpush.bf16.xpose.msra.mxu0 0
    %109 = vmatpush.bf16.xpose.msra.mxu0 %v101
    %110 = vmatpush.bf16.xpose.msra.mxu0 %v98
    %111 = vmatmul.bf16.gmra.mxu0 %v92
    %v112 = vpop.f32.mrf.mxu0
    %v113 = vadd.f32 0.0, %v112
    %v114 = vpop.f32.mrf.mxu0
    %v115 = vadd.f32 0.0, %v114
    %116 = vmatmul.bf16.gmra.mxu0 %v95
    %v117 = vpop.f32.mrf.mxu0
    %v118 = vadd.f32 0.0, %v117
    %v119 = vpop.f32.mrf.mxu0
    %v120 = vadd.f32 0.0, %v119
    %121 = vdwg.mxu0
    %v126 = vunpack.c.l.b16 %v34
    %v127 = vunpack.c.l.b16 %v35
    %v128 = vunpack.c.l.b16 %v36
    %v129 = vunpack.c.l.b16 %v37
    %v130 = vpack.c.b16 %v127, %v126
    %v131 = vpack.c.b16 %v129, %v128
    %v136 = vunpack.c.l.b16 %v42
    %v137 = vunpack.c.l.b16 %v43
    %v138 = vunpack.c.l.b16 %v44
    %v139 = vunpack.c.l.b16 %v45
    %v140 = vpack.c.b16 %v137, %v136
    %v141 = vpack.c.b16 %v139, %v138
    %v143 = vsel %vm90, %v130, 0
    %v146 = vsel %vm90, %v131, 0
    %v149 = vsel %vm90, %v140, 0
    %v152 = vsel %vm90, %v141, 0
    %154 = vmatpush.bf16.xpose.msra.mxu0 0
    %155 = vmatpush.bf16.xpose.msra.mxu0 0
    %156 = vmatpush.bf16.xpose.msra.mxu0 0
    %157 = vmatpush.bf16.xpose.msra.mxu0 0
    %158 = vmatpush.bf16.xpose.msra.mxu0 0
    %159 = vmatpush.bf16.xpose.msra.mxu0 0
    %160 = vmatpush.bf16.xpose.msra.mxu0 %v152
    %161 = vmatpush.bf16.xpose.msra.mxu0 %v149
    %162 = vmatmul.bf16.gmra.mxu0 %v143
    %v163 = vpop.f32.mrf.mxu0
    %v164 = vadd.f32 0.0, %v163
    %v165 = vpop.f32.mrf.mxu0
    %v166 = vadd.f32 0.0, %v165
    %167 = vmatmul.bf16.gmra.mxu0 %v146
    %v168 = vpop.f32.mrf.mxu0
    %v169 = vadd.f32 0.0, %v168
    %v170 = vpop.f32.mrf.mxu0
    %v171 = vadd.f32 0.0, %v170
    %172 = vdwg.mxu0
    %v177 = vunpack.c.l.b16 %v46
    %v178 = vunpack.c.l.b16 %v47
    %v179 = vunpack.c.l.b16 %v48
    %v180 = vunpack.c.l.b16 %v49
    %v181 = vpack.c.b16 %v178, %v177
    %v182 = vpack.c.b16 %v180, %v179
    %v184 = vsel %vm90, %v181, 0
    %v187 = vsel %vm90, %v182, 0
    %189 = vmatpush.bf16.xpose.msra.mxu0 0
    %190 = vmatpush.bf16.xpose.msra.mxu0 0
    %191 = vmatpush.bf16.xpose.msra.mxu0 0
    %192 = vmatpush.bf16.xpose.msra.mxu0 0
    %193 = vmatpush.bf16.xpose.msra.mxu0 0
    %194 = vmatpush.bf16.xpose.msra.mxu0 0
    %195 = vmatpush.bf16.xpose.msra.mxu0 %v187
    %196 = vmatpush.bf16.xpose.msra.mxu0 %v184
    %197 = vmatmul.bf16.gmra.mxu0 %v92
    %v198 = vpop.f32.mrf.mxu0
    %v199 = vadd.f32 0.0, %v198
    %v200 = vpop.f32.mrf.mxu0
    %v201 = vadd.f32 0.0, %v200
    %202 = vmatmul.bf16.gmra.mxu0 %v95
    %v203 = vpop.f32.mrf.mxu0
    %v204 = vadd.f32 0.0, %v203
    %v205 = vpop.f32.mrf.mxu0
    %v206 = vadd.f32 0.0, %v205
    %207 = vdwg.mxu0
    %v212 = vunpack.c.l.b16 %v50
    %v213 = vunpack.c.l.b16 %v51
    %v214 = vunpack.c.l.b16 %v52
    %v215 = vunpack.c.l.b16 %v53
    %v216 = vpack.c.b16 %v213, %v212
    %v217 = vpack.c.b16 %v215, %v214
    %v219 = vsel %vm90, %v216, 0
    %v222 = vsel %vm90, %v217, 0
    %224 = vmatpush.bf16.xpose.msra.mxu0 0
    %225 = vmatpush.bf16.xpose.msra.mxu0 0
    %226 = vmatpush.bf16.xpose.msra.mxu0 0
    %227 = vmatpush.bf16.xpose.msra.mxu0 0
    %228 = vmatpush.bf16.xpose.msra.mxu0 0
    %229 = vmatpush.bf16.xpose.msra.mxu0 0
    %230 = vmatpush.bf16.xpose.msra.mxu0 %v222
    %231 = vmatpush.bf16.xpose.msra.mxu0 %v219
    %232 = vmatmul.bf16.gmra.mxu0 %v143
    %v233 = vpop.f32.mrf.mxu0
    %v234 = vadd.f32 0.0, %v233
    %v235 = vpop.f32.mrf.mxu0
    %v236 = vadd.f32 0.0, %v235
    %237 = vmatmul.bf16.gmra.mxu0 %v146
    %v238 = vpop.f32.mrf.mxu0
    %v239 = vadd.f32 0.0, %v238
    %v240 = vpop.f32.mrf.mxu0
    %v241 = vadd.f32 0.0, %v240
    %242 = vdwg.mxu0
    %v247 = vunpack.c.l.b16 %v54
    %v248 = vunpack.c.l.b16 %v55
    %v249 = vunpack.c.l.b16 %v56
    %v250 = vunpack.c.l.b16 %v57
    %v251 = vpack.c.b16 %v248, %v247
    %v252 = vpack.c.b16 %v250, %v249
    %v254 = vsel %vm90, %v251, 0
    %v257 = vsel %vm90, %v252, 0
    %259 = vmatpush.bf16.xpose.msra.mxu0 0
    %260 = vmatpush.bf16.xpose.msra.mxu0 0
    %261 = vmatpush.bf16.xpose.msra.mxu0 0
    %262 = vmatpush.bf16.xpose.msra.mxu0 0
    %263 = vmatpush.bf16.xpose.msra.mxu0 0
    %264 = vmatpush.bf16.xpose.msra.mxu0 0
    %265 = vmatpush.bf16.xpose.msra.mxu0 %v257
    %266 = vmatpush.bf16.xpose.msra.mxu0 %v254
    %267 = vmatmul.bf16.gmra.mxu0 %v92
    %v268 = vpop.f32.mrf.mxu0
    %v269 = vadd.f32 0.0, %v268
    %v270 = vpop.f32.mrf.mxu0
    %v271 = vadd.f32 0.0, %v270
    %272 = vmatmul.bf16.gmra.mxu0 %v95
    %v273 = vpop.f32.mrf.mxu0
    %v274 = vadd.f32 0.0, %v273
    %v275 = vpop.f32.mrf.mxu0
    %v276 = vadd.f32 0.0, %v275
    %277 = vdwg.mxu0
    %v282 = vunpack.c.l.b16 %v58
    %v283 = vunpack.c.l.b16 %v59
    %v284 = vunpack.c.l.b16 %v60
    %v285 = vunpack.c.l.b16 %v61
    %v286 = vpack.c.b16 %v283, %v282
    %v287 = vpack.c.b16 %v285, %v284
    %v289 = vsel %vm90, %v286, 0
    %v292 = vsel %vm90, %v287, 0
    %294 = vmatpush.bf16.xpose.msra.mxu0 0
    %295 = vmatpush.bf16.xpose.msra.mxu0 0
    %296 = vmatpush.bf16.xpose.msra.mxu0 0
    %297 = vmatpush.bf16.xpose.msra.mxu0 0
    %298 = vmatpush.bf16.xpose.msra.mxu0 0
    %299 = vmatpush.bf16.xpose.msra.mxu0 0
    %300 = vmatpush.bf16.xpose.msra.mxu0 %v292
    %301 = vmatpush.bf16.xpose.msra.mxu0 %v289
    %302 = vmatmul.bf16.gmra.mxu0 %v143
    %v303 = vpop.f32.mrf.mxu0
    %v304 = vadd.f32 0.0, %v303
    %v305 = vpop.f32.mrf.mxu0
    %v306 = vadd.f32 0.0, %v305
    %307 = vmatmul.bf16.gmra.mxu0 %v146
    %v308 = vpop.f32.mrf.mxu0
    %v309 = vadd.f32 0.0, %v308
    %v310 = vpop.f32.mrf.mxu0
    %v311 = vadd.f32 0.0, %v310
    %312 = vdwg.mxu0
    %v317 = vunpack.c.l.b16 %v62
    %v318 = vunpack.c.l.b16 %v63
    %v319 = vunpack.c.l.b16 %v64
    %v320 = vunpack.c.l.b16 %v65
    %v321 = vpack.c.b16 %v318, %v317
    %v322 = vpack.c.b16 %v320, %v319
    %v324 = vsel %vm90, %v321, 0
    %v327 = vsel %vm90, %v322, 0
    %329 = vmatpush.bf16.xpose.msra.mxu0 0
    %330 = vmatpush.bf16.xpose.msra.mxu0 0
    %331 = vmatpush.bf16.xpose.msra.mxu0 0
    %332 = vmatpush.bf16.xpose.msra.mxu0 0
    %333 = vmatpush.bf16.xpose.msra.mxu0 0
    %334 = vmatpush.bf16.xpose.msra.mxu0 0
    %335 = vmatpush.bf16.xpose.msra.mxu0 %v327
    %336 = vmatpush.bf16.xpose.msra.mxu0 %v324
    %337 = vmatmul.bf16.gmra.mxu0 %v92
    %v338 = vpop.f32.mrf.mxu0
    %v339 = vadd.f32 0.0, %v338
    %v340 = vpop.f32.mrf.mxu0
    %v341 = vadd.f32 0.0, %v340
    %342 = vmatmul.bf16.gmra.mxu0 %v95
    %v343 = vpop.f32.mrf.mxu0
    %v344 = vadd.f32 0.0, %v343
    %v345 = vpop.f32.mrf.mxu0
    %v346 = vadd.f32 0.0, %v345
    %347 = vdwg.mxu0
    %v352 = vunpack.c.l.b16 %v66
    %v353 = vunpack.c.l.b16 %v67
    %v354 = vunpack.c.l.b16 %v68
    %v355 = vunpack.c.l.b16 %v69
    %v356 = vpack.c.b16 %v353, %v352
    %v357 = vpack.c.b16 %v355, %v354
    %v359 = vsel %vm90, %v356, 0
    %v362 = vsel %vm90, %v357, 0
    %364 = vmatpush.bf16.xpose.msra.mxu0 0
    %365 = vmatpush.bf16.xpose.msra.mxu0 0
    %366 = vmatpush.bf16.xpose.msra.mxu0 0
    %367 = vmatpush.bf16.xpose.msra.mxu0 0
    %368 = vmatpush.bf16.xpose.msra.mxu0 0
    %369 = vmatpush.bf16.xpose.msra.mxu0 0
    %370 = vmatpush.bf16.xpose.msra.mxu0 %v362
    %371 = vmatpush.bf16.xpose.msra.mxu0 %v359
    %372 = vmatmul.bf16.gmra.mxu0 %v143
    %v373 = vpop.f32.mrf.mxu0
    %v374 = vadd.f32 0.0, %v373
    %v375 = vpop.f32.mrf.mxu0
    %v376 = vadd.f32 0.0, %v375
    %377 = vmatmul.bf16.gmra.mxu0 %v146
    %v378 = vpop.f32.mrf.mxu0
    %v379 = vadd.f32 0.0, %v378
    %v380 = vpop.f32.mrf.mxu0
    %v381 = vadd.f32 0.0, %v380
    %382 = vdwg.mxu0
    %v383 = vmul.f32 %v113, 0.17677669
    %v384 = vmul.f32 %v115, 0.17677669
    %v385 = vmul.f32 %v118, 0.17677669
    %v386 = vmul.f32 %v120, 0.17677669
    %v387 = vmul.f32 %v164, 0.17677669
    %v388 = vmul.f32 %v166, 0.17677669
    %v389 = vmul.f32 %v169, 0.17677669
    %v390 = vmul.f32 %v171, 0.17677669
    %v391 = vmul.f32 %v199, 0.17677669
    %v392 = vmul.f32 %v201, 0.17677669
    %v393 = vmul.f32 %v204, 0.17677669
    %v394 = vmul.f32 %v206, 0.17677669
    %v395 = vmul.f32 %v234, 0.17677669
    %v396 = vmul.f32 %v236, 0.17677669
    %v397 = vmul.f32 %v239, 0.17677669
    %v398 = vmul.f32 %v241, 0.17677669
    %v399 = vmul.f32 %v269, 0.17677669
    %v400 = vmul.f32 %v271, 0.17677669
    %v401 = vmul.f32 %v274, 0.17677669
    %v402 = vmul.f32 %v276, 0.17677669
    %v403 = vmul.f32 %v304, 0.17677669
    %v404 = vmul.f32 %v306, 0.17677669
    %v405 = vmul.f32 %v309, 0.17677669
    %v406 = vmul.f32 %v311, 0.17677669
    %v407 = vmul.f32 %v339, 0.17677669
    %v408 = vmul.f32 %v341, 0.17677669
    %v409 = vmul.f32 %v344, 0.17677669
    %v410 = vmul.f32 %v346, 0.17677669
    %v411 = vmul.f32 %v374, 0.17677669
    %v412 = vmul.f32 %v376, 0.17677669
    %v413 = vmul.f32 %v379, 0.17677669
    %v414 = vmul.f32 %v381, 0.17677669
    %v415 = vld [vmem:[%s2] sm:$0xff]
    %v416 = vld [vmem:[%s2 + $0x8] sm:$0xff]
    %v417 = vld [vmem:[%s2 + $0x10] sm:$0xff]
    %v418 = vld [vmem:[%s2 + $0x18] sm:$0xff]
    %v419 = vld [vmem:[%s2 + $0x20] sm:$0xff]
    %v420 = vld [vmem:[%s2 + $0x28] sm:$0xff]
    %v421 = vld [vmem:[%s2 + $0x30] sm:$0xff]
    %v422 = vld [vmem:[%s2 + $0x38] sm:$0xff]
    %v423 = vld [vmem:[%s2 + $0x40] sm:$0xff]
    %v424 = vld [vmem:[%s2 + $0x48] sm:$0xff]
    %v425 = vld [vmem:[%s2 + $0x50] sm:$0xff]
    %v426 = vld [vmem:[%s2 + $0x58] sm:$0xff]
    %v427 = vld [vmem:[%s2 + $0x60] sm:$0xff]
    %v428 = vld [vmem:[%s2 + $0x68] sm:$0xff]
    %v429 = vld [vmem:[%s2 + $0x70] sm:$0xff]
    %v430 = vld [vmem:[%s2 + $0x78] sm:$0xff]
    %v431 = vld [vmem:[%s2 + $0x80] sm:$0xff]
    %v432 = vld [vmem:[%s2 + $0x88] sm:$0xff]
    %v433 = vld [vmem:[%s2 + $0x90] sm:$0xff]
    %v434 = vld [vmem:[%s2 + $0x98] sm:$0xff]
    %v435 = vld [vmem:[%s2 + $0xa0] sm:$0xff]
    %v436 = vld [vmem:[%s2 + $0xa8] sm:$0xff]
    %v437 = vld [vmem:[%s2 + $0xb0] sm:$0xff]
    %v438 = vld [vmem:[%s2 + $0xb8] sm:$0xff]
    %v439 = vld [vmem:[%s2 + $0xc0] sm:$0xff]
    %v440 = vld [vmem:[%s2 + $0xc8] sm:$0xff]
    %v441 = vld [vmem:[%s2 + $0xd0] sm:$0xff]
    %v442 = vld [vmem:[%s2 + $0xd8] sm:$0xff]
    %v443 = vld [vmem:[%s2 + $0xe0] sm:$0xff]
    %v444 = vld [vmem:[%s2 + $0xe8] sm:$0xff]
    %v445 = vld [vmem:[%s2 + $0xf0] sm:$0xff]
    %v446 = vld [vmem:[%s2 + $0xf8] sm:$0xff]
    %vm447 = vcmp.eq.f32.partialorder %v415, 0.0
    %vm448 = vcmp.eq.f32.partialorder %v416, 0.0
    %vm449 = vcmp.eq.f32.partialorder %v417, 0.0
    %vm450 = vcmp.eq.f32.partialorder %v418, 0.0
    %vm451 = vcmp.eq.f32.partialorder %v419, 0.0
    %vm452 = vcmp.eq.f32.partialorder %v420, 0.0
    %vm453 = vcmp.eq.f32.partialorder %v421, 0.0
    %vm454 = vcmp.eq.f32.partialorder %v422, 0.0
    %vm455 = vcmp.eq.f32.partialorder %v423, 0.0
    %vm456 = vcmp.eq.f32.partialorder %v424, 0.0
    %vm457 = vcmp.eq.f32.partialorder %v425, 0.0
    %vm458 = vcmp.eq.f32.partialorder %v426, 0.0
    %vm459 = vcmp.eq.f32.partialorder %v427, 0.0
    %vm460 = vcmp.eq.f32.partialorder %v428, 0.0
    %vm461 = vcmp.eq.f32.partialorder %v429, 0.0
    %vm462 = vcmp.eq.f32.partialorder %v430, 0.0
    %vm463 = vcmp.eq.f32.partialorder %v431, 0.0
    %vm464 = vcmp.eq.f32.partialorder %v432, 0.0
    %vm465 = vcmp.eq.f32.partialorder %v433, 0.0
    %vm466 = vcmp.eq.f32.partialorder %v434, 0.0
    %vm467 = vcmp.eq.f32.partialorder %v435, 0.0
    %vm468 = vcmp.eq.f32.partialorder %v436, 0.0
    %vm469 = vcmp.eq.f32.partialorder %v437, 0.0
    %vm470 = vcmp.eq.f32.partialorder %v438, 0.0
    %vm471 = vcmp.eq.f32.partialorder %v439, 0.0
    %vm472 = vcmp.eq.f32.partialorder %v440, 0.0
    %vm473 = vcmp.eq.f32.partialorder %v441, 0.0
    %vm474 = vcmp.eq.f32.partialorder %v442, 0.0
    %vm475 = vcmp.eq.f32.partialorder %v443, 0.0
    %vm476 = vcmp.eq.f32.partialorder %v444, 0.0
    %vm477 = vcmp.eq.f32.partialorder %v445, 0.0
    %vm478 = vcmp.eq.f32.partialorder %v446, 0.0
    %v479 = vsel %vm447, 1, 0
    %v480 = vsel %vm448, 1, 0
    %v481 = vsel %vm449, 1, 0
    %v482 = vsel %vm450, 1, 0
    %v483 = vsel %vm451, 1, 0
    %v484 = vsel %vm452, 1, 0
    %v485 = vsel %vm453, 1, 0
    %v486 = vsel %vm454, 1, 0
    %v487 = vsel %vm455, 1, 0
    %v488 = vsel %vm456, 1, 0
    %v489 = vsel %vm457, 1, 0
    %v490 = vsel %vm458, 1, 0
    %v491 = vsel %vm459, 1, 0
    %v492 = vsel %vm460, 1, 0
    %v493 = vsel %vm461, 1, 0
    %v494 = vsel %vm462, 1, 0
    %v495 = vsel %vm463, 1, 0
    %v496 = vsel %vm464, 1, 0
    %v497 = vsel %vm465, 1, 0
    %v498 = vsel %vm466, 1, 0
    %v499 = vsel %vm467, 1, 0
    %v500 = vsel %vm468, 1, 0
    %v501 = vsel %vm469, 1, 0
    %v502 = vsel %vm470, 1, 0
    %v503 = vsel %vm471, 1, 0
    %v504 = vsel %vm472, 1, 0
    %v505 = vsel %vm473, 1, 0
    %v506 = vsel %vm474, 1, 0
    %v507 = vsel %vm475, 1, 0
    %v508 = vsel %vm476, 1, 0
    %v509 = vsel %vm477, 1, 0
    %v510 = vsel %vm478, 1, 0
    %511 = vset.pattern.permute.xlu0 0
    %512 = vperm.xlu0 %511, %v479
    %v513 = vpop.permute.xlu0 %512
    %514 = vset.pattern.permute.xlu0 0
    %515 = vperm.xlu0 %514, %v480
    %v516 = vpop.permute.xlu0 %515
    %517 = vset.pattern.permute.xlu0 0
    %518 = vperm.xlu0 %517, %v481
    %v519 = vpop.permute.xlu0 %518
    %520 = vset.pattern.permute.xlu0 0
    %521 = vperm.xlu0 %520, %v482
    %v522 = vpop.permute.xlu0 %521
    %523 = vset.pattern.permute.xlu0 0
    %524 = vperm.xlu0 %523, %v483
    %v525 = vpop.permute.xlu0 %524
    %526 = vset.pattern.permute.xlu0 0
    %527 = vperm.xlu0 %526, %v484
    %v528 = vpop.permute.xlu0 %527
    %529 = vset.pattern.permute.xlu0 0
    %530 = vperm.xlu0 %529, %v485
    %v531 = vpop.permute.xlu0 %530
    %532 = vset.pattern.permute.xlu0 0
    %533 = vperm.xlu0 %532, %v486
    %v534 = vpop.permute.xlu0 %533
    %535 = vset.pattern.permute.xlu0 0
    %536 = vperm.xlu0 %535, %v487
    %v537 = vpop.permute.xlu0 %536
    %538 = vset.pattern.permute.xlu0 0
    %539 = vperm.xlu0 %538, %v488
    %v540 = vpop.permute.xlu0 %539
    %541 = vset.pattern.permute.xlu0 0
    %542 = vperm.xlu0 %541, %v489
    %v543 = vpop.permute.xlu0 %542
    %544 = vset.pattern.permute.xlu0 0
    %545 = vperm.xlu0 %544, %v490
    %v546 = vpop.permute.xlu0 %545
    %547 = vset.pattern.permute.xlu0 0
    %548 = vperm.xlu0 %547, %v491
    %v549 = vpop.permute.xlu0 %548
    %550 = vset.pattern.permute.xlu0 0
    %551 = vperm.xlu0 %550, %v492
    %v552 = vpop.permute.xlu0 %551
    %553 = vset.pattern.permute.xlu0 0
    %554 = vperm.xlu0 %553, %v493
    %v555 = vpop.permute.xlu0 %554
    %556 = vset.pattern.permute.xlu0 0
    %557 = vperm.xlu0 %556, %v494
    %v558 = vpop.permute.xlu0 %557
    %559 = vset.pattern.permute.xlu0 0
    %560 = vperm.xlu0 %559, %v495
    %v561 = vpop.permute.xlu0 %560
    %562 = vset.pattern.permute.xlu0 0
    %563 = vperm.xlu0 %562, %v496
    %v564 = vpop.permute.xlu0 %563
    %565 = vset.pattern.permute.xlu0 0
    %566 = vperm.xlu0 %565, %v497
    %v567 = vpop.permute.xlu0 %566
    %568 = vset.pattern.permute.xlu0 0
    %569 = vperm.xlu0 %568, %v498
    %v570 = vpop.permute.xlu0 %569
    %571 = vset.pattern.permute.xlu0 0
    %572 = vperm.xlu0 %571, %v499
    %v573 = vpop.permute.xlu0 %572
    %574 = vset.pattern.permute.xlu0 0
    %575 = vperm.xlu0 %574, %v500
    %v576 = vpop.permute.xlu0 %575
    %577 = vset.pattern.permute.xlu0 0
    %578 = vperm.xlu0 %577, %v501
    %v579 = vpop.permute.xlu0 %578
    %580 = vset.pattern.permute.xlu0 0
    %581 = vperm.xlu0 %580, %v502
    %v582 = vpop.permute.xlu0 %581
    %583 = vset.pattern.permute.xlu0 0
    %584 = vperm.xlu0 %583, %v503
    %v585 = vpop.permute.xlu0 %584
    %586 = vset.pattern.permute.xlu0 0
    %587 = vperm.xlu0 %586, %v504
    %v588 = vpop.permute.xlu0 %587
    %589 = vset.pattern.permute.xlu0 0
    %590 = vperm.xlu0 %589, %v505
    %v591 = vpop.permute.xlu0 %590
    %592 = vset.pattern.permute.xlu0 0
    %593 = vperm.xlu0 %592, %v506
    %v594 = vpop.permute.xlu0 %593
    %595 = vset.pattern.permute.xlu0 0
    %596 = vperm.xlu0 %595, %v507
    %v597 = vpop.permute.xlu0 %596
    %598 = vset.pattern.permute.xlu0 0
    %599 = vperm.xlu0 %598, %v508
    %v600 = vpop.permute.xlu0 %599
    %601 = vset.pattern.permute.xlu0 0
    %602 = vperm.xlu0 %601, %v509
    %v603 = vpop.permute.xlu0 %602
    %604 = vset.pattern.permute.xlu0 0
    %605 = vperm.xlu0 %604, %v510
    %v606 = vpop.permute.xlu0 %605
    %vm607 = vcmp.eq.s32.totalorder %v513, 1
    %vm608 = vcmp.eq.s32.totalorder %v516, 1
    %vm609 = vcmp.eq.s32.totalorder %v519, 1
    %vm610 = vcmp.eq.s32.totalorder %v522, 1
    %vm611 = vcmp.eq.s32.totalorder %v525, 1
    %vm612 = vcmp.eq.s32.totalorder %v528, 1
    %vm613 = vcmp.eq.s32.totalorder %v531, 1
    %vm614 = vcmp.eq.s32.totalorder %v534, 1
    %vm615 = vcmp.eq.s32.totalorder %v537, 1
    %vm616 = vcmp.eq.s32.totalorder %v540, 1
    %vm617 = vcmp.eq.s32.totalorder %v543, 1
    %vm618 = vcmp.eq.s32.totalorder %v546, 1
    %vm619 = vcmp.eq.s32.totalorder %v549, 1
    %vm620 = vcmp.eq.s32.totalorder %v552, 1
    %vm621 = vcmp.eq.s32.totalorder %v555, 1
    %vm622 = vcmp.eq.s32.totalorder %v558, 1
    %vm623 = vcmp.eq.s32.totalorder %v561, 1
    %vm624 = vcmp.eq.s32.totalorder %v564, 1
    %vm625 = vcmp.eq.s32.totalorder %v567, 1
    %vm626 = vcmp.eq.s32.totalorder %v570, 1
    %vm627 = vcmp.eq.s32.totalorder %v573, 1
    %vm628 = vcmp.eq.s32.totalorder %v576, 1
    %vm629 = vcmp.eq.s32.totalorder %v579, 1
    %vm630 = vcmp.eq.s32.totalorder %v582, 1
    %vm631 = vcmp.eq.s32.totalorder %v585, 1
    %vm632 = vcmp.eq.s32.totalorder %v588, 1
    %vm633 = vcmp.eq.s32.totalorder %v591, 1
    %vm634 = vcmp.eq.s32.totalorder %v594, 1
    %vm635 = vcmp.eq.s32.totalorder %v597, 1
    %vm636 = vcmp.eq.s32.totalorder %v600, 1
    %vm637 = vcmp.eq.s32.totalorder %v603, 1
    %vm638 = vcmp.eq.s32.totalorder %v606, 1
    %v639 = vsel %vm607, -1e+09, %v383
    %v640 = vsel %vm608, -1e+09, %v384
    %v641 = vsel %vm609, -1e+09, %v385
    %v642 = vsel %vm610, -1e+09, %v386
    %v643 = vsel %vm611, -1e+09, %v387
    %v644 = vsel %vm612, -1e+09, %v388
    %v645 = vsel %vm613, -1e+09, %v389
    %v646 = vsel %vm614, -1e+09, %v390
    %v647 = vsel %vm615, -1e+09, %v391
    %v648 = vsel %vm616, -1e+09, %v392
    %v649 = vsel %vm617, -1e+09, %v393
    %v650 = vsel %vm618, -1e+09, %v394
    %v651 = vsel %vm619, -1e+09, %v395
    %v652 = vsel %vm620, -1e+09, %v396
    %v653 = vsel %vm621, -1e+09, %v397
    %v654 = vsel %vm622, -1e+09, %v398
    %v655 = vsel %vm623, -1e+09, %v399
    %v656 = vsel %vm624, -1e+09, %v400
    %v657 = vsel %vm625, -1e+09, %v401
    %v658 = vsel %vm626, -1e+09, %v402
    %v659 = vsel %vm627, -1e+09, %v403
    %v660 = vsel %vm628, -1e+09, %v404
    %v661 = vsel %vm629, -1e+09, %v405
    %v662 = vsel %vm630, -1e+09, %v406
    %v663 = vsel %vm631, -1e+09, %v407
    %v664 = vsel %vm632, -1e+09, %v408
    %v665 = vsel %vm633, -1e+09, %v409
    %v666 = vsel %vm634, -1e+09, %v410
    %v667 = vsel %vm635, -1e+09, %v411
    %v668 = vsel %vm636, -1e+09, %v412
    %v669 = vsel %vm637, -1e+09, %v413
    %v670 = vsel %vm638, -1e+09, %v414
    %v671 = vld [vmem:[%s3] sm:$0x1]
    %v672 = vld [vmem:[%s3 + $0x1] sm:$0x1]
    %v673 = vld [vmem:[%s3 + $0x2] sm:$0x1]
    %v674 = vld [vmem:[%s3 + $0x3] sm:$0x1]
    %v675 = vld [vmem:[%s3 + $0x4] sm:$0x1]
    %v676 = vld [vmem:[%s3 + $0x5] sm:$0x1]
    %v677 = vld [vmem:[%s3 + $0x6] sm:$0x1]
    %v678 = vld [vmem:[%s3 + $0x7] sm:$0x1]
    %vm679 = vcmp.eq.f32.partialorder %v671, 0.0
    %vm680 = vcmp.eq.f32.partialorder %v672, 0.0
    %vm681 = vcmp.eq.f32.partialorder %v673, 0.0
    %vm682 = vcmp.eq.f32.partialorder %v674, 0.0
    %vm683 = vcmp.eq.f32.partialorder %v675, 0.0
    %vm684 = vcmp.eq.f32.partialorder %v676, 0.0
    %vm685 = vcmp.eq.f32.partialorder %v677, 0.0
    %vm686 = vcmp.eq.f32.partialorder %v678, 0.0
    %v687 = vsel %vm679, 1, 0
    %v688 = vsel %vm680, 1, 0
    %v689 = vsel %vm681, 1, 0
    %v690 = vsel %vm682, 1, 0
    %v691 = vsel %vm683, 1, 0
    %v692 = vsel %vm684, 1, 0
    %v693 = vsel %vm685, 1, 0
    %v694 = vsel %vm686, 1, 0
    %v695 = vperm.slane %v687, 0
    %v696 = vperm.slane %v688, 0
    %v697 = vperm.slane %v689, 0
    %v698 = vperm.slane %v690, 0
    %v699 = vperm.slane %v691, 0
    %v700 = vperm.slane %v692, 0
    %v701 = vperm.slane %v693, 0
    %v702 = vperm.slane %v694, 0
    %vm703 = vcmp.eq.s32.totalorder %v695, 1
    %vm704 = vcmp.eq.s32.totalorder %v696, 1
    %vm705 = vcmp.eq.s32.totalorder %v697, 1
    %vm706 = vcmp.eq.s32.totalorder %v698, 1
    %vm707 = vcmp.eq.s32.totalorder %v699, 1
    %vm708 = vcmp.eq.s32.totalorder %v700, 1
    %vm709 = vcmp.eq.s32.totalorder %v701, 1
    %vm710 = vcmp.eq.s32.totalorder %v702, 1
    %v711 = vsel %vm703, -1e+09, %v639
    %v712 = vsel %vm703, -1e+09, %v640
    %v713 = vsel %vm703, -1e+09, %v641
    %v714 = vsel %vm703, -1e+09, %v642
    %v715 = vsel %vm704, -1e+09, %v643
    %v716 = vsel %vm704, -1e+09, %v644
    %v717 = vsel %vm704, -1e+09, %v645
    %v718 = vsel %vm704, -1e+09, %v646
    %v719 = vsel %vm705, -1e+09, %v647
    %v720 = vsel %vm705, -1e+09, %v648
    %v721 = vsel %vm705, -1e+09, %v649
    %v722 = vsel %vm705, -1e+09, %v650
    %v723 = vsel %vm706, -1e+09, %v651
    %v724 = vsel %vm706, -1e+09, %v652
    %v725 = vsel %vm706, -1e+09, %v653
    %v726 = vsel %vm706, -1e+09, %v654
    %v727 = vsel %vm707, -1e+09, %v655
    %v728 = vsel %vm707, -1e+09, %v656
    %v729 = vsel %vm707, -1e+09, %v657
    %v730 = vsel %vm707, -1e+09, %v658
    %v731 = vsel %vm708, -1e+09, %v659
    %v732 = vsel %vm708, -1e+09, %v660
    %v733 = vsel %vm708, -1e+09, %v661
    %v734 = vsel %vm708, -1e+09, %v662
    %v735 = vsel %vm709, -1e+09, %v663
    %v736 = vsel %vm709, -1e+09, %v664
    %v737 = vsel %vm709, -1e+09, %v665
    %v738 = vsel %vm709, -1e+09, %v666
    %v739 = vsel %vm710, -1e+09, %v667
    %v740 = vsel %vm710, -1e+09, %v668
    %v741 = vsel %vm710, -1e+09, %v669
    %v742 = vsel %vm710, -1e+09, %v670
    %v743 = vsel %vm90, %v711, -inf
    %744 = vmax.xlane.f32.xlu0 %v743
    %v745 = vpop.xlane.xlu0 %744
    %v746 = vsel %vm90, %v712, -inf
    %747 = vmax.xlane.f32.xlu0 %v746
    %v748 = vpop.xlane.xlu0 %747
    %v749 = vsel %vm90, %v713, -inf
    %750 = vmax.xlane.f32.xlu0 %v749
    %v751 = vpop.xlane.xlu0 %750
    %v752 = vsel %vm90, %v714, -inf
    %753 = vmax.xlane.f32.xlu0 %v752
    %v754 = vpop.xlane.xlu0 %753
    %v755 = vsel %vm90, %v715, -inf
    %756 = vmax.xlane.f32.xlu0 %v755
    %v757 = vpop.xlane.xlu0 %756
    %v758 = vsel %vm90, %v716, -inf
    %759 = vmax.xlane.f32.xlu0 %v758
    %v760 = vpop.xlane.xlu0 %759
    %v761 = vsel %vm90, %v717, -inf
    %762 = vmax.xlane.f32.xlu0 %v761
    %v763 = vpop.xlane.xlu0 %762
    %v764 = vsel %vm90, %v718, -inf
    %765 = vmax.xlane.f32.xlu0 %v764
    %v766 = vpop.xlane.xlu0 %765
    %v767 = vsel %vm90, %v719, -inf
    %768 = vmax.xlane.f32.xlu0 %v767
    %v769 = vpop.xlane.xlu0 %768
    %v770 = vsel %vm90, %v720, -inf
    %771 = vmax.xlane.f32.xlu0 %v770
    %v772 = vpop.xlane.xlu0 %771
    %v773 = vsel %vm90, %v721, -inf
    %774 = vmax.xlane.f32.xlu0 %v773
    %v775 = vpop.xlane.xlu0 %774
    %v776 = vsel %vm90, %v722, -inf
    %777 = vmax.xlane.f32.xlu0 %v776
    %v778 = vpop.xlane.xlu0 %777
    %v779 = vsel %vm90, %v723, -inf
    %780 = vmax.xlane.f32.xlu0 %v779
    %v781 = vpop.xlane.xlu0 %780
    %v782 = vsel %vm90, %v724, -inf
    %783 = vmax.xlane.f32.xlu0 %v782
    %v784 = vpop.xlane.xlu0 %783
    %v785 = vsel %vm90, %v725, -inf
    %786 = vmax.xlane.f32.xlu0 %v785
    %v787 = vpop.xlane.xlu0 %786
    %v788 = vsel %vm90, %v726, -inf
    %789 = vmax.xlane.f32.xlu0 %v788
    %v790 = vpop.xlane.xlu0 %789
    %v791 = vsel %vm90, %v727, -inf
    %792 = vmax.xlane.f32.xlu0 %v791
    %v793 = vpop.xlane.xlu0 %792
    %v794 = vsel %vm90, %v728, -inf
    %795 = vmax.xlane.f32.xlu0 %v794
    %v796 = vpop.xlane.xlu0 %795
    %v797 = vsel %vm90, %v729, -inf
    %798 = vmax.xlane.f32.xlu0 %v797
    %v799 = vpop.xlane.xlu0 %798
    %v800 = vsel %vm90, %v730, -inf
    %801 = vmax.xlane.f32.xlu0 %v800
    %v802 = vpop.xlane.xlu0 %801
    %v803 = vsel %vm90, %v731, -inf
    %804 = vmax.xlane.f32.xlu0 %v803
    %v805 = vpop.xlane.xlu0 %804
    %v806 = vsel %vm90, %v732, -inf
    %807 = vmax.xlane.f32.xlu0 %v806
    %v808 = vpop.xlane.xlu0 %807
    %v809 = vsel %vm90, %v733, -inf
    %810 = vmax.xlane.f32.xlu0 %v809
    %v811 = vpop.xlane.xlu0 %810
    %v812 = vsel %vm90, %v734, -inf
    %813 = vmax.xlane.f32.xlu0 %v812
    %v814 = vpop.xlane.xlu0 %813
    %v815 = vsel %vm90, %v735, -inf
    %816 = vmax.xlane.f32.xlu0 %v815
    %v817 = vpop.xlane.xlu0 %816
    %v818 = vsel %vm90, %v736, -inf
    %819 = vmax.xlane.f32.xlu0 %v818
    %v820 = vpop.xlane.xlu0 %819
    %v821 = vsel %vm90, %v737, -inf
    %822 = vmax.xlane.f32.xlu0 %v821
    %v823 = vpop.xlane.xlu0 %822
    %v824 = vsel %vm90, %v738, -inf
    %825 = vmax.xlane.f32.xlu0 %v824
    %v826 = vpop.xlane.xlu0 %825
    %v827 = vsel %vm90, %v739, -inf
    %828 = vmax.xlane.f32.xlu0 %v827
    %v829 = vpop.xlane.xlu0 %828
    %v830 = vsel %vm90, %v740, -inf
    %831 = vmax.xlane.f32.xlu0 %v830
    %v832 = vpop.xlane.xlu0 %831
    %v833 = vsel %vm90, %v741, -inf
    %834 = vmax.xlane.f32.xlu0 %v833
    %v835 = vpop.xlane.xlu0 %834
    %v836 = vsel %vm90, %v742, -inf
    %837 = vmax.xlane.f32.xlu0 %v836
    %v838 = vpop.xlane.xlu0 %837
    %v839 = vsub.f32 %v711, %v745
    %v840 = vsub.f32 %v712, %v748
    %v841 = vsub.f32 %v713, %v751
    %v842 = vsub.f32 %v714, %v754
    %v843 = vsub.f32 %v715, %v757
    %v844 = vsub.f32 %v716, %v760
    %v845 = vsub.f32 %v717, %v763
    %v846 = vsub.f32 %v718, %v766
    %v847 = vsub.f32 %v719, %v769
    %v848 = vsub.f32 %v720, %v772
    %v849 = vsub.f32 %v721, %v775
    %v850 = vsub.f32 %v722, %v778
    %v851 = vsub.f32 %v723, %v781
    %v852 = vsub.f32 %v724, %v784
    %v853 = vsub.f32 %v725, %v787
    %v854 = vsub.f32 %v726, %v790
    %v855 = vsub.f32 %v727, %v793
    %v856 = vsub.f32 %v728, %v796
    %v857 = vsub.f32 %v729, %v799
    %v858 = vsub.f32 %v730, %v802
    %v859 = vsub.f32 %v731, %v805
    %v860 = vsub.f32 %v732, %v808
    %v861 = vsub.f32 %v733, %v811
    %v862 = vsub.f32 %v734, %v814
    %v863 = vsub.f32 %v735, %v817
    %v864 = vsub.f32 %v736, %v820
    %v865 = vsub.f32 %v737, %v823
    %v866 = vsub.f32 %v738, %v826
    %v867 = vsub.f32 %v739, %v829
    %v868 = vsub.f32 %v740, %v832
    %v869 = vsub.f32 %v741, %v835
    %v870 = vsub.f32 %v742, %v838
    %v871 = vmul.f32 %v839, 1.442695
    %v872 = vpow.pop %v871
    %v873 = vmul.f32 %v840, 1.442695
    %v874 = vpow.pop %v873
    %v875 = vmul.f32 %v841, 1.442695
    %v876 = vpow.pop %v875
    %v877 = vmul.f32 %v842, 1.442695
    %v878 = vpow.pop %v877
    %v879 = vmul.f32 %v843, 1.442695
    %v880 = vpow.pop %v879
    %v881 = vmul.f32 %v844, 1.442695
    %v882 = vpow.pop %v881
    %v883 = vmul.f32 %v845, 1.442695
    %v884 = vpow.pop %v883
    %v885 = vmul.f32 %v846, 1.442695
    %v886 = vpow.pop %v885
    %v887 = vmul.f32 %v847, 1.442695
    %v888 = vpow.pop %v887
    %v889 = vmul.f32 %v848, 1.442695
    %v890 = vpow.pop %v889
    %v891 = vmul.f32 %v849, 1.442695
    %v892 = vpow.pop %v891
    %v893 = vmul.f32 %v850, 1.442695
    %v894 = vpow.pop %v893
    %v895 = vmul.f32 %v851, 1.442695
    %v896 = vpow.pop %v895
    %v897 = vmul.f32 %v852, 1.442695
    %v898 = vpow.pop %v897
    %v899 = vmul.f32 %v853, 1.442695
    %v900 = vpow.pop %v899
    %v901 = vmul.f32 %v854, 1.442695
    %v902 = vpow.pop %v901
    %v903 = vmul.f32 %v855, 1.442695
    %v904 = vpow.pop %v903
    %v905 = vmul.f32 %v856, 1.442695
    %v906 = vpow.pop %v905
    %v907 = vmul.f32 %v857, 1.442695
    %v908 = vpow.pop %v907
    %v909 = vmul.f32 %v858, 1.442695
    %v910 = vpow.pop %v909
    %v911 = vmul.f32 %v859, 1.442695
    %v912 = vpow.pop %v911
    %v913 = vmul.f32 %v860, 1.442695
    %v914 = vpow.pop %v913
    %v915 = vmul.f32 %v861, 1.442695
    %v916 = vpow.pop %v915
    %v917 = vmul.f32 %v862, 1.442695
    %v918 = vpow.pop %v917
    %v919 = vmul.f32 %v863, 1.442695
    %v920 = vpow.pop %v919
    %v921 = vmul.f32 %v864, 1.442695
    %v922 = vpow.pop %v921
    %v923 = vmul.f32 %v865, 1.442695
    %v924 = vpow.pop %v923
    %v925 = vmul.f32 %v866, 1.442695
    %v926 = vpow.pop %v925
    %v927 = vmul.f32 %v867, 1.442695
    %v928 = vpow.pop %v927
    %v929 = vmul.f32 %v868, 1.442695
    %v930 = vpow.pop %v929
    %v931 = vmul.f32 %v869, 1.442695
    %v932 = vpow.pop %v931
    %v933 = vmul.f32 %v870, 1.442695
    %v934 = vpow.pop %v933
    %v935 = vsel %vm90, %v872, 0.0
    %936 = vadd.xlane.f32.xlu0 %v935
    %v937 = vpop.xlane.xlu0 %936
    %v938 = vsel %vm90, %v874, 0.0
    %939 = vadd.xlane.f32.xlu0 %v938
    %v940 = vpop.xlane.xlu0 %939
    %v941 = vsel %vm90, %v876, 0.0
    %942 = vadd.xlane.f32.xlu0 %v941
    %v943 = vpop.xlane.xlu0 %942
    %v944 = vsel %vm90, %v878, 0.0
    %945 = vadd.xlane.f32.xlu0 %v944
    %v946 = vpop.xlane.xlu0 %945
    %v947 = vsel %vm90, %v880, 0.0
    %948 = vadd.xlane.f32.xlu0 %v947
    %v949 = vpop.xlane.xlu0 %948
    %v950 = vsel %vm90, %v882, 0.0
    %951 = vadd.xlane.f32.xlu0 %v950
    %v952 = vpop.xlane.xlu0 %951
    %v953 = vsel %vm90, %v884, 0.0
    %954 = vadd.xlane.f32.xlu0 %v953
    %v955 = vpop.xlane.xlu0 %954
    %v956 = vsel %vm90, %v886, 0.0
    %957 = vadd.xlane.f32.xlu0 %v956
    %v958 = vpop.xlane.xlu0 %957
    %v959 = vsel %vm90, %v888, 0.0
    %960 = vadd.xlane.f32.xlu0 %v959
    %v961 = vpop.xlane.xlu0 %960
    %v962 = vsel %vm90, %v890, 0.0
    %963 = vadd.xlane.f32.xlu0 %v962
    %v964 = vpop.xlane.xlu0 %963
    %v965 = vsel %vm90, %v892, 0.0
    %966 = vadd.xlane.f32.xlu0 %v965
    %v967 = vpop.xlane.xlu0 %966
    %v968 = vsel %vm90, %v894, 0.0
    %969 = vadd.xlane.f32.xlu0 %v968
    %v970 = vpop.xlane.xlu0 %969
    %v971 = vsel %vm90, %v896, 0.0
    %972 = vadd.xlane.f32.xlu0 %v971
    %v973 = vpop.xlane.xlu0 %972
    %v974 = vsel %vm90, %v898, 0.0
    %975 = vadd.xlane.f32.xlu0 %v974
    %v976 = vpop.xlane.xlu0 %975
    %v977 = vsel %vm90, %v900, 0.0
    %978 = vadd.xlane.f32.xlu0 %v977
    %v979 = vpop.xlane.xlu0 %978
    %v980 = vsel %vm90, %v902, 0.0
    %981 = vadd.xlane.f32.xlu0 %v980
    %v982 = vpop.xlane.xlu0 %981
    %v983 = vsel %vm90, %v904, 0.0
    %984 = vadd.xlane.f32.xlu0 %v983
    %v985 = vpop.xlane.xlu0 %984
    %v986 = vsel %vm90, %v906, 0.0
    %987 = vadd.xlane.f32.xlu0 %v986
    %v988 = vpop.xlane.xlu0 %987
    %v989 = vsel %vm90, %v908, 0.0
    %990 = vadd.xlane.f32.xlu0 %v989
    %v991 = vpop.xlane.xlu0 %990
    %v992 = vsel %vm90, %v910, 0.0
    %993 = vadd.xlane.f32.xlu0 %v992
    %v994 = vpop.xlane.xlu0 %993
    %v995 = vsel %vm90, %v912, 0.0
    %996 = vadd.xlane.f32.xlu0 %v995
    %v997 = vpop.xlane.xlu0 %996
    %v998 = vsel %vm90, %v914, 0.0
    %999 = vadd.xlane.f32.xlu0 %v998
    %v1000 = vpop.xlane.xlu0 %999
    %v1001 = vsel %vm90, %v916, 0.0
    %1002 = vadd.xlane.f32.xlu0 %v1001
    %v1003 = vpop.xlane.xlu0 %1002
    %v1004 = vsel %vm90, %v918, 0.0
    %1005 = vadd.xlane.f32.xlu0 %v1004
    %v1006 = vpop.xlane.xlu0 %1005
    %v1007 = vsel %vm90, %v920, 0.0
    %1008 = vadd.xlane.f32.xlu0 %v1007
    %v1009 = vpop.xlane.xlu0 %1008
    %v1010 = vsel %vm90, %v922, 0.0
    %1011 = vadd.xlane.f32.xlu0 %v1010
    %v1012 = vpop.xlane.xlu0 %1011
    %v1013 = vsel %vm90, %v924, 0.0
    %1014 = vadd.xlane.f32.xlu0 %v1013
    %v1015 = vpop.xlane.xlu0 %1014
    %v1016 = vsel %vm90, %v926, 0.0
    %1017 = vadd.xlane.f32.xlu0 %v1016
    %v1018 = vpop.xlane.xlu0 %1017
    %v1019 = vsel %vm90, %v928, 0.0
    %1020 = vadd.xlane.f32.xlu0 %v1019
    %v1021 = vpop.xlane.xlu0 %1020
    %v1022 = vsel %vm90, %v930, 0.0
    %1023 = vadd.xlane.f32.xlu0 %v1022
    %v1024 = vpop.xlane.xlu0 %1023
    %v1025 = vsel %vm90, %v932, 0.0
    %1026 = vadd.xlane.f32.xlu0 %v1025
    %v1027 = vpop.xlane.xlu0 %1026
    %v1028 = vsel %vm90, %v934, 0.0
    %1029 = vadd.xlane.f32.xlu0 %v1028
    %v1030 = vpop.xlane.xlu0 %1029
    %v1031 = vrcp.pop %v937
    %v1032 = vrcp.pop %v940
    %v1033 = vrcp.pop %v943
    %v1034 = vrcp.pop %v946
    %v1035 = vrcp.pop %v949
    %v1036 = vrcp.pop %v952
    %v1037 = vrcp.pop %v955
    %v1038 = vrcp.pop %v958
    %v1039 = vrcp.pop %v961
    %v1040 = vrcp.pop %v964
    %v1041 = vrcp.pop %v967
    %v1042 = vrcp.pop %v970
    %v1043 = vrcp.pop %v973
    %v1044 = vrcp.pop %v976
    %v1045 = vrcp.pop %v979
    %v1046 = vrcp.pop %v982
    %v1047 = vrcp.pop %v985
    %v1048 = vrcp.pop %v988
    %v1049 = vrcp.pop %v991
    %v1050 = vrcp.pop %v994
    %v1051 = vrcp.pop %v997
    %v1052 = vrcp.pop %v1000
    %v1053 = vrcp.pop %v1003
    %v1054 = vrcp.pop %v1006
    %v1055 = vrcp.pop %v1009
    %v1056 = vrcp.pop %v1012
    %v1057 = vrcp.pop %v1015
    %v1058 = vrcp.pop %v1018
    %v1059 = vrcp.pop %v1021
    %v1060 = vrcp.pop %v1024
    %v1061 = vrcp.pop %v1027
    %v1062 = vrcp.pop %v1030
    %v1063 = vmul.f32 %v872, %v1031
    %v1064 = vmul.f32 %v874, %v1032
    %v1065 = vmul.f32 %v876, %v1033
    %v1066 = vmul.f32 %v878, %v1034
    %v1067 = vmul.f32 %v880, %v1035
    %v1068 = vmul.f32 %v882, %v1036
    %v1069 = vmul.f32 %v884, %v1037
    %v1070 = vmul.f32 %v886, %v1038
    %v1071 = vmul.f32 %v888, %v1039
    %v1072 = vmul.f32 %v890, %v1040
    %v1073 = vmul.f32 %v892, %v1041
    %v1074 = vmul.f32 %v894, %v1042
    %v1075 = vmul.f32 %v896, %v1043
    %v1076 = vmul.f32 %v898, %v1044
    %v1077 = vmul.f32 %v900, %v1045
    %v1078 = vmul.f32 %v902, %v1046
    %v1079 = vmul.f32 %v904, %v1047
    %v1080 = vmul.f32 %v906, %v1048
    %v1081 = vmul.f32 %v908, %v1049
    %v1082 = vmul.f32 %v910, %v1050
    %v1083 = vmul.f32 %v912, %v1051
    %v1084 = vmul.f32 %v914, %v1052
    %v1085 = vmul.f32 %v916, %v1053
    %v1086 = vmul.f32 %v918, %v1054
    %v1087 = vmul.f32 %v920, %v1055
    %v1088 = vmul.f32 %v922, %v1056
    %v1089 = vmul.f32 %v924, %v1057
    %v1090 = vmul.f32 %v926, %v1058
    %v1091 = vmul.f32 %v928, %v1059
    %v1092 = vmul.f32 %v930, %v1060
    %v1093 = vmul.f32 %v932, %v1061
    %v1094 = vmul.f32 %v934, %v1062
    %v1095 = vpack.c.bf16 %v1063, %v1063
    %v1096 = vpack.c.bf16 %v1064, %v1064
    %v1097 = vpack.c.bf16 %v1065, %v1065
    %v1098 = vpack.c.bf16 %v1066, %v1066
    %v1099 = vpack.c.bf16 %v1067, %v1067
    %v1100 = vpack.c.bf16 %v1068, %v1068
    %v1101 = vpack.c.bf16 %v1069, %v1069
    %v1102 = vpack.c.bf16 %v1070, %v1070
    %v1103 = vpack.c.bf16 %v1071, %v1071
    %v1104 = vpack.c.bf16 %v1072, %v1072
    %v1105 = vpack.c.bf16 %v1073, %v1073
    %v1106 = vpack.c.bf16 %v1074, %v1074
    %v1107 = vpack.c.bf16 %v1075, %v1075
    %v1108 = vpack.c.bf16 %v1076, %v1076
    %v1109 = vpack.c.bf16 %v1077, %v1077
    %v1110 = vpack.c.bf16 %v1078, %v1078
    %v1111 = vpack.c.bf16 %v1079, %v1079
    %v1112 = vpack.c.bf16 %v1080, %v1080
    %v1113 = vpack.c.bf16 %v1081, %v1081
    %v1114 = vpack.c.bf16 %v1082, %v1082
    %v1115 = vpack.c.bf16 %v1083, %v1083
    %v1116 = vpack.c.bf16 %v1084, %v1084
    %v1117 = vpack.c.bf16 %v1085, %v1085
    %v1118 = vpack.c.bf16 %v1086, %v1086
    %v1119 = vpack.c.bf16 %v1087, %v1087
    %v1120 = vpack.c.bf16 %v1088, %v1088
    %v1121 = vpack.c.bf16 %v1089, %v1089
    %v1122 = vpack.c.bf16 %v1090, %v1090
    %v1123 = vpack.c.bf16 %v1091, %v1091
    %v1124 = vpack.c.bf16 %v1092, %v1092
    %v1125 = vpack.c.bf16 %v1093, %v1093
    %v1126 = vpack.c.bf16 %v1094, %v1094
    %vm1127 = vcmask 257024
    %1128 = vst.msk [vmem:[#allocation2] sm:$0xf] %vm1127, %v1095
    %1129 = vst.msk [vmem:[#allocation2 + $0x4] sm:$0xf] %vm1127, %v1096
    %1130 = vst.msk [vmem:[#allocation2 + $0x8] sm:$0xf] %vm1127, %v1097
    %1131 = vst.msk [vmem:[#allocation2 + $0xc] sm:$0xf] %vm1127, %v1098
    %1132 = vst.msk [vmem:[#allocation2 + $0x10] sm:$0xf] %vm1127, %v1099
    %1133 = vst.msk [vmem:[#allocation2 + $0x14] sm:$0xf] %vm1127, %v1100
    %1134 = vst.msk [vmem:[#allocation2 + $0x18] sm:$0xf] %vm1127, %v1101
    %1135 = vst.msk [vmem:[#allocation2 + $0x1c] sm:$0xf] %vm1127, %v1102
    %1136 = vst.msk [vmem:[#allocation2 + $0x20] sm:$0xf] %vm1127, %v1103
    %1137 = vst.msk [vmem:[#allocation2 + $0x24] sm:$0xf] %vm1127, %v1104
    %1138 = vst.msk [vmem:[#allocation2 + $0x28] sm:$0xf] %vm1127, %v1105
    %1139 = vst.msk [vmem:[#allocation2 + $0x2c] sm:$0xf] %vm1127, %v1106
    %1140 = vst.msk [vmem:[#allocation2 + $0x30] sm:$0xf] %vm1127, %v1107
    %1141 = vst.msk [vmem:[#allocation2 + $0x34] sm:$0xf] %vm1127, %v1108
    %1142 = vst.msk [vmem:[#allocation2 + $0x38] sm:$0xf] %vm1127, %v1109
    %1143 = vst.msk [vmem:[#allocation2 + $0x3c] sm:$0xf] %vm1127, %v1110
    %1144 = vst.msk [vmem:[#allocation2 + $0x40] sm:$0xf] %vm1127, %v1111
    %1145 = vst.msk [vmem:[#allocation2 + $0x44] sm:$0xf] %vm1127, %v1112
    %1146 = vst.msk [vmem:[#allocation2 + $0x48] sm:$0xf] %vm1127, %v1113
    %1147 = vst.msk [vmem:[#allocation2 + $0x4c] sm:$0xf] %vm1127, %v1114
    %1148 = vst.msk [vmem:[#allocation2 + $0x50] sm:$0xf] %vm1127, %v1115
    %1149 = vst.msk [vmem:[#allocation2 + $0x54] sm:$0xf] %vm1127, %v1116
    %1150 = vst.msk [vmem:[#allocation2 + $0x58] sm:$0xf] %vm1127, %v1117
    %1151 = vst.msk [vmem:[#allocation2 + $0x5c] sm:$0xf] %vm1127, %v1118
    %1152 = vst.msk [vmem:[#allocation2 + $0x60] sm:$0xf] %vm1127, %v1119
    %1153 = vst.msk [vmem:[#allocation2 + $0x64] sm:$0xf] %vm1127, %v1120
    %1154 = vst.msk [vmem:[#allocation2 + $0x68] sm:$0xf] %vm1127, %v1121
    %1155 = vst.msk [vmem:[#allocation2 + $0x6c] sm:$0xf] %vm1127, %v1122
    %1156 = vst.msk [vmem:[#allocation2 + $0x70] sm:$0xf] %vm1127, %v1123
    %1157 = vst.msk [vmem:[#allocation2 + $0x74] sm:$0xf] %vm1127, %v1124
    %1158 = vst.msk [vmem:[#allocation2 + $0x78] sm:$0xf] %vm1127, %v1125
    %1159 = vst.msk [vmem:[#allocation2 + $0x7c] sm:$0xf] %vm1127, %v1126
    %v1164 = vunpack.c.l.b16 %v1095
    %v1165 = vunpack.c.l.b16 %v1096
    %v1166 = vunpack.c.l.b16 %v1097
    %v1167 = vunpack.c.l.b16 %v1098
    %v1168 = vpack.c.b16 %v1165, %v1164
    %v1169 = vpack.c.b16 %v1167, %v1166
    %v1173 = vsel %vm90, %v1168, 0
    %v1176 = vsel %vm90, %v1169, 0
    %1178 = vmatpush.bf16.msra.mxu0 0
    %1179 = vmatpush.bf16.msra.mxu0 0
    %1180 = vmatpush.bf16.msra.mxu0 0
    %1181 = vmatpush.bf16.msra.mxu0 0
    %1182 = vmatpush.bf16.msra.mxu0 0
    %1183 = vmatpush.bf16.msra.mxu0 0
    %1184 = vmatpush.bf16.msra.mxu0 %v89
    %1185 = vmatpush.bf16.msra.mxu0 %v88
    %1186 = vmatmul.bf16.gmra.mxu0 %v1173
    %v1187 = vpop.f32.mrf.mxu0
    %v1188 = vadd.f32 0.0, %v1187
    %v1189 = vpop.f32.mrf.mxu0
    %v1190 = vadd.f32 0.0, %v1189
    %1191 = vmatmul.bf16.gmra.mxu0 %v1176
    %v1192 = vpop.f32.mrf.mxu0
    %v1193 = vadd.f32 0.0, %v1192
    %v1194 = vpop.f32.mrf.mxu0
    %v1195 = vadd.f32 0.0, %v1194
    %1196 = vdwg.mxu0
    %v1201 = vunpack.c.l.b16 %v1099
    %v1202 = vunpack.c.l.b16 %v1100
    %v1203 = vunpack.c.l.b16 %v1101
    %v1204 = vunpack.c.l.b16 %v1102
    %v1205 = vpack.c.b16 %v1202, %v1201
    %v1206 = vpack.c.b16 %v1204, %v1203
    %v1210 = vsel %vm90, %v1205, 0
    %v1213 = vsel %vm90, %v1206, 0
    %1215 = vmatpush.bf16.msra.mxu0 0
    %1216 = vmatpush.bf16.msra.mxu0 0
    %1217 = vmatpush.bf16.msra.mxu0 0
    %1218 = vmatpush.bf16.msra.mxu0 0
    %1219 = vmatpush.bf16.msra.mxu0 0
    %1220 = vmatpush.bf16.msra.mxu0 0
    %1221 = vmatpush.bf16.msra.mxu0 %v141
    %1222 = vmatpush.bf16.msra.mxu0 %v140
    %1223 = vmatmul.bf16.gmra.mxu0 %v1210
    %v1224 = vpop.f32.mrf.mxu0
    %v1225 = vadd.f32 0.0, %v1224
    %v1226 = vpop.f32.mrf.mxu0
    %v1227 = vadd.f32 0.0, %v1226
    %1228 = vmatmul.bf16.gmra.mxu0 %v1213
    %v1229 = vpop.f32.mrf.mxu0
    %v1230 = vadd.f32 0.0, %v1229
    %v1231 = vpop.f32.mrf.mxu0
    %v1232 = vadd.f32 0.0, %v1231
    %1233 = vdwg.mxu0
    %v1238 = vunpack.c.l.b16 %v1103
    %v1239 = vunpack.c.l.b16 %v1104
    %v1240 = vunpack.c.l.b16 %v1105
    %v1241 = vunpack.c.l.b16 %v1106
    %v1242 = vpack.c.b16 %v1239, %v1238
    %v1243 = vpack.c.b16 %v1241, %v1240
    %v1247 = vsel %vm90, %v1242, 0
    %v1250 = vsel %vm90, %v1243, 0
    %1252 = vmatpush.bf16.msra.mxu0 0
    %1253 = vmatpush.bf16.msra.mxu0 0
    %1254 = vmatpush.bf16.msra.mxu0 0
    %1255 = vmatpush.bf16.msra.mxu0 0
    %1256 = vmatpush.bf16.msra.mxu0 0
    %1257 = vmatpush.bf16.msra.mxu0 0
    %1258 = vmatpush.bf16.msra.mxu0 %v182
    %1259 = vmatpush.bf16.msra.mxu0 %v181
    %1260 = vmatmul.bf16.gmra.mxu0 %v1247
    %v1261 = vpop.f32.mrf.mxu0
    %v1262 = vadd.f32 0.0, %v1261
    %v1263 = vpop.f32.mrf.mxu0
    %v1264 = vadd.f32 0.0, %v1263
    %1265 = vmatmul.bf16.gmra.mxu0 %v1250
    %v1266 = vpop.f32.mrf.mxu0
    %v1267 = vadd.f32 0.0, %v1266
    %v1268 = vpop.f32.mrf.mxu0
    %v1269 = vadd.f32 0.0, %v1268
    %1270 = vdwg.mxu0
    %v1275 = vunpack.c.l.b16 %v1107
    %v1276 = vunpack.c.l.b16 %v1108
    %v1277 = vunpack.c.l.b16 %v1109
    %v1278 = vunpack.c.l.b16 %v1110
    %v1279 = vpack.c.b16 %v1276, %v1275
    %v1280 = vpack.c.b16 %v1278, %v1277
    %v1284 = vsel %vm90, %v1279, 0
    %v1287 = vsel %vm90, %v1280, 0
    %1289 = vmatpush.bf16.msra.mxu0 0
    %1290 = vmatpush.bf16.msra.mxu0 0
    %1291 = vmatpush.bf16.msra.mxu0 0
    %1292 = vmatpush.bf16.msra.mxu0 0
    %1293 = vmatpush.bf16.msra.mxu0 0
    %1294 = vmatpush.bf16.msra.mxu0 0
    %1295 = vmatpush.bf16.msra.mxu0 %v217
    %1296 = vmatpush.bf16.msra.mxu0 %v216
    %1297 = vmatmul.bf16.gmra.mxu0 %v1284
    %v1298 = vpop.f32.mrf.mxu0
    %v1299 = vadd.f32 0.0, %v1298
    %v1300 = vpop.f32.mrf.mxu0
    %v1301 = vadd.f32 0.0, %v1300
    %1302 = vmatmul.bf16.gmra.mxu0 %v1287
    %v1303 = vpop.f32.mrf.mxu0
    %v1304 = vadd.f32 0.0, %v1303
    %v1305 = vpop.f32.mrf.mxu0
    %v1306 = vadd.f32 0.0, %v1305
    %1307 = vdwg.mxu0
    %v1312 = vunpack.c.l.b16 %v1111
    %v1313 = vunpack.c.l.b16 %v1112
    %v1314 = vunpack.c.l.b16 %v1113
    %v1315 = vunpack.c.l.b16 %v1114
    %v1316 = vpack.c.b16 %v1313, %v1312
    %v1317 = vpack.c.b16 %v1315, %v1314
    %v1321 = vsel %vm90, %v1316, 0
    %v1324 = vsel %vm90, %v1317, 0
    %1326 = vmatpush.bf16.msra.mxu0 0
    %1327 = vmatpush.bf16.msra.mxu0 0
    %1328 = vmatpush.bf16.msra.mxu0 0
    %1329 = vmatpush.bf16.msra.mxu0 0
    %1330 = vmatpush.bf16.msra.mxu0 0
    %1331 = vmatpush.bf16.msra.mxu0 0
    %1332 = vmatpush.bf16.msra.mxu0 %v252
    %1333 = vmatpush.bf16.msra.mxu0 %v251
    %1334 = vmatmul.bf16.gmra.mxu0 %v1321
    %v1335 = vpop.f32.mrf.mxu0
    %v1336 = vadd.f32 0.0, %v1335
    %v1337 = vpop.f32.mrf.mxu0
    %v1338 = vadd.f32 0.0, %v1337
    %1339 = vmatmul.bf16.gmra.mxu0 %v1324
    %v1340 = vpop.f32.mrf.mxu0
    %v1341 = vadd.f32 0.0, %v1340
    %v1342 = vpop.f32.mrf.mxu0
    %v1343 = vadd.f32 0.0, %v1342
    %1344 = vdwg.mxu0
    %v1349 = vunpack.c.l.b16 %v1115
    %v1350 = vunpack.c.l.b16 %v1116
    %v1351 = vunpack.c.l.b16 %v1117
    %v1352 = vunpack.c.l.b16 %v1118
    %v1353 = vpack.c.b16 %v1350, %v1349
    %v1354 = vpack.c.b16 %v1352, %v1351
    %v1358 = vsel %vm90, %v1353, 0
    %v1361 = vsel %vm90, %v1354, 0
    %1363 = vmatpush.bf16.msra.mxu0 0
    %1364 = vmatpush.bf16.msra.mxu0 0
    %1365 = vmatpush.bf16.msra.mxu0 0
    %1366 = vmatpush.bf16.msra.mxu0 0
    %1367 = vmatpush.bf16.msra.mxu0 0
    %1368 = vmatpush.bf16.msra.mxu0 0
    %1369 = vmatpush.bf16.msra.mxu0 %v287
    %1370 = vmatpush.bf16.msra.mxu0 %v286
    %1371 = vmatmul.bf16.gmra.mxu0 %v1358
    %v1372 = vpop.f32.mrf.mxu0
    %v1373 = vadd.f32 0.0, %v1372
    %v1374 = vpop.f32.mrf.mxu0
    %v1375 = vadd.f32 0.0, %v1374
    %1376 = vmatmul.bf16.gmra.mxu0 %v1361
    %v1377 = vpop.f32.mrf.mxu0
    %v1378 = vadd.f32 0.0, %v1377
    %v1379 = vpop.f32.mrf.mxu0
    %v1380 = vadd.f32 0.0, %v1379
    %1381 = vdwg.mxu0
    %v1386 = vunpack.c.l.b16 %v1119
    %v1387 = vunpack.c.l.b16 %v1120
    %v1388 = vunpack.c.l.b16 %v1121
    %v1389 = vunpack.c.l.b16 %v1122
    %v1390 = vpack.c.b16 %v1387, %v1386
    %v1391 = vpack.c.b16 %v1389, %v1388
    %v1395 = vsel %vm90, %v1390, 0
    %v1398 = vsel %vm90, %v1391, 0
    %1400 = vmatpush.bf16.msra.mxu0 0
    %1401 = vmatpush.bf16.msra.mxu0 0
    %1402 = vmatpush.bf16.msra.mxu0 0
    %1403 = vmatpush.bf16.msra.mxu0 0
    %1404 = vmatpush.bf16.msra.mxu0 0
    %1405 = vmatpush.bf16.msra.mxu0 0
    %1406 = vmatpush.bf16.msra.mxu0 %v322
    %1407 = vmatpush.bf16.msra.mxu0 %v321
    %1408 = vmatmul.bf16.gmra.mxu0 %v1395
    %v1409 = vpop.f32.mrf.mxu0
    %v1410 = vadd.f32 0.0, %v1409
    %v1411 = vpop.f32.mrf.mxu0
    %v1412 = vadd.f32 0.0, %v1411
    %1413 = vmatmul.bf16.gmra.mxu0 %v1398
    %v1414 = vpop.f32.mrf.mxu0
    %v1415 = vadd.f32 0.0, %v1414
    %v1416 = vpop.f32.mrf.mxu0
    %v1417 = vadd.f32 0.0, %v1416
    %1418 = vdwg.mxu0
    %v1423 = vunpack.c.l.b16 %v1123
    %v1424 = vunpack.c.l.b16 %v1124
    %v1425 = vunpack.c.l.b16 %v1125
    %v1426 = vunpack.c.l.b16 %v1126
    %v1427 = vpack.c.b16 %v1424, %v1423
    %v1428 = vpack.c.b16 %v1426, %v1425
    %v1432 = vsel %vm90, %v1427, 0
    %v1435 = vsel %vm90, %v1428, 0
    %1437 = vmatpush.bf16.msra.mxu0 0
    %1438 = vmatpush.bf16.msra.mxu0 0
    %1439 = vmatpush.bf16.msra.mxu0 0
    %1440 = vmatpush.bf16.msra.mxu0 0
    %1441 = vmatpush.bf16.msra.mxu0 0
    %1442 = vmatpush.bf16.msra.mxu0 0
    %1443 = vmatpush.bf16.msra.mxu0 %v357
    %1444 = vmatpush.bf16.msra.mxu0 %v356
    %1445 = vmatmul.bf16.gmra.mxu0 %v1432
    %v1446 = vpop.f32.mrf.mxu0
    %v1447 = vadd.f32 0.0, %v1446
    %v1448 = vpop.f32.mrf.mxu0
    %v1449 = vadd.f32 0.0, %v1448
    %1450 = vmatmul.bf16.gmra.mxu0 %v1435
    %v1451 = vpop.f32.mrf.mxu0
    %v1452 = vadd.f32 0.0, %v1451
    %v1453 = vpop.f32.mrf.mxu0
    %v1454 = vadd.f32 0.0, %v1453
    %1455 = vdwg.mxu0
    %v1456 = vpack.c.bf16 %v1188, %v1188
    %v1457 = vpack.c.bf16 %v1190, %v1190
    %v1458 = vpack.c.bf16 %v1193, %v1193
    %v1459 = vpack.c.bf16 %v1195, %v1195
    %v1460 = vpack.c.bf16 %v1225, %v1225
    %v1461 = vpack.c.bf16 %v1227, %v1227
    %v1462 = vpack.c.bf16 %v1230, %v1230
    %v1463 = vpack.c.bf16 %v1232, %v1232
    %v1464 = vpack.c.bf16 %v1262, %v1262
    %v1465 = vpack.c.bf16 %v1264, %v1264
    %v1466 = vpack.c.bf16 %v1267, %v1267
    %v1467 = vpack.c.bf16 %v1269, %v1269
    %v1468 = vpack.c.bf16 %v1299, %v1299
    %v1469 = vpack.c.bf16 %v1301, %v1301
    %v1470 = vpack.c.bf16 %v1304, %v1304
    %v1471 = vpack.c.bf16 %v1306, %v1306
    %v1472 = vpack.c.bf16 %v1336, %v1336
    %v1473 = vpack.c.bf16 %v1338, %v1338
    %v1474 = vpack.c.bf16 %v1341, %v1341
    %v1475 = vpack.c.bf16 %v1343, %v1343
    %v1476 = vpack.c.bf16 %v1373, %v1373
    %v1477 = vpack.c.bf16 %v1375, %v1375
    %v1478 = vpack.c.bf16 %v1378, %v1378
    %v1479 = vpack.c.bf16 %v1380, %v1380
    %v1480 = vpack.c.bf16 %v1410, %v1410
    %v1481 = vpack.c.bf16 %v1412, %v1412
    %v1482 = vpack.c.bf16 %v1415, %v1415
    %v1483 = vpack.c.bf16 %v1417, %v1417
    %v1484 = vpack.c.bf16 %v1447, %v1447
    %v1485 = vpack.c.bf16 %v1449, %v1449
    %v1486 = vpack.c.bf16 %v1452, %v1452
    %v1487 = vpack.c.bf16 %v1454, %v1454
    %v1488 = vunpack.c.l.bf16 %v30
    %v1489 = vunpack.c.l.bf16 %v31
    %v1490 = vunpack.c.l.bf16 %v32
    %v1491 = vunpack.c.l.bf16 %v33
    %v1492 = vunpack.c.l.bf16 %v34
    %v1493 = vunpack.c.l.bf16 %v35
    %v1494 = vunpack.c.l.bf16 %v36
    %v1495 = vunpack.c.l.bf16 %v37
    %v1496 = vunpack.c.l.bf16 %v1456
    %v1497 = vunpack.c.l.bf16 %v1457
    %v1498 = vunpack.c.l.bf16 %v1458
    %v1499 = vunpack.c.l.bf16 %v1459
    %v1500 = vunpack.c.l.bf16 %v1460
    %v1501 = vunpack.c.l.bf16 %v1461
    %v1502 = vunpack.c.l.bf16 %v1462
    %v1503 = vunpack.c.l.bf16 %v1463
    %v1504 = vunpack.c.l.bf16 %v1464
    %v1505 = vunpack.c.l.bf16 %v1465
    %v1506 = vunpack.c.l.bf16 %v1466
    %v1507 = vunpack.c.l.bf16 %v1467
    %v1508 = vunpack.c.l.bf16 %v1468
    %v1509 = vunpack.c.l.bf16 %v1469
    %v1510 = vunpack.c.l.bf16 %v1470
    %v1511 = vunpack.c.l.bf16 %v1471
    %v1512 = vunpack.c.l.bf16 %v1472
    %v1513 = vunpack.c.l.bf16 %v1473
    %v1514 = vunpack.c.l.bf16 %v1474
    %v1515 = vunpack.c.l.bf16 %v1475
    %v1516 = vunpack.c.l.bf16 %v1476
    %v1517 = vunpack.c.l.bf16 %v1477
    %v1518 = vunpack.c.l.bf16 %v1478
    %v1519 = vunpack.c.l.bf16 %v1479
    %v1520 = vunpack.c.l.bf16 %v1480
    %v1521 = vunpack.c.l.bf16 %v1481
    %v1522 = vunpack.c.l.bf16 %v1482
    %v1523 = vunpack.c.l.bf16 %v1483
    %v1524 = vunpack.c.l.bf16 %v1484
    %v1525 = vunpack.c.l.bf16 %v1485
    %v1526 = vunpack.c.l.bf16 %v1486
    %v1527 = vunpack.c.l.bf16 %v1487
    %v1528 = vsub.f32 %v1488, %v1496
    %v1529 = vsub.f32 %v1489, %v1497
    %v1530 = vsub.f32 %v1490, %v1498
    %v1531 = vsub.f32 %v1491, %v1499
    %v1532 = vsub.f32 %v1492, %v1500
    %v1533 = vsub.f32 %v1493, %v1501
    %v1534 = vsub.f32 %v1494, %v1502
    %v1535 = vsub.f32 %v1495, %v1503
    %v1536 = vsub.f32 %v1488, %v1504
    %v1537 = vsub.f32 %v1489, %v1505
    %v1538 = vsub.f32 %v1490, %v1506
    %v1539 = vsub.f32 %v1491, %v1507
    %v1540 = vsub.f32 %v1492, %v1508
    %v1541 = vsub.f32 %v1493, %v1509
    %v1542 = vsub.f32 %v1494, %v1510
    %v1543 = vsub.f32 %v1495, %v1511
    %v1544 = vsub.f32 %v1488, %v1512
    %v1545 = vsub.f32 %v1489, %v1513
    %v1546 = vsub.f32 %v1490, %v1514
    %v1547 = vsub.f32 %v1491, %v1515
    %v1548 = vsub.f32 %v1492, %v1516
    %v1549 = vsub.f32 %v1493, %v1517
    %v1550 = vsub.f32 %v1494, %v1518
    %v1551 = vsub.f32 %v1495, %v1519
    %v1552 = vsub.f32 %v1488, %v1520
    %v1553 = vsub.f32 %v1489, %v1521
    %v1554 = vsub.f32 %v1490, %v1522
    %v1555 = vsub.f32 %v1491, %v1523
    %v1556 = vsub.f32 %v1492, %v1524
    %v1557 = vsub.f32 %v1493, %v1525
    %v1558 = vsub.f32 %v1494, %v1526
    %v1559 = vsub.f32 %v1495, %v1527
    %v1560 = vpack.c.bf16 %v1528, %v1528
    %v1561 = vpack.c.bf16 %v1529, %v1529
    %v1562 = vpack.c.bf16 %v1530, %v1530
    %v1563 = vpack.c.bf16 %v1531, %v1531
    %v1564 = vpack.c.bf16 %v1532, %v1532
    %v1565 = vpack.c.bf16 %v1533, %v1533
    %v1566 = vpack.c.bf16 %v1534, %v1534
    %v1567 = vpack.c.bf16 %v1535, %v1535
    %v1568 = vpack.c.bf16 %v1536, %v1536
    %v1569 = vpack.c.bf16 %v1537, %v1537
    %v1570 = vpack.c.bf16 %v1538, %v1538
    %v1571 = vpack.c.bf16 %v1539, %v1539
    %v1572 = vpack.c.bf16 %v1540, %v1540
    %v1573 = vpack.c.bf16 %v1541, %v1541
    %v1574 = vpack.c.bf16 %v1542, %v1542
    %v1575 = vpack.c.bf16 %v1543, %v1543
    %v1576 = vpack.c.bf16 %v1544, %v1544
    %v1577 = vpack.c.bf16 %v1545, %v1545
    %v1578 = vpack.c.bf16 %v1546, %v1546
    %v1579 = vpack.c.bf16 %v1547, %v1547
    %v1580 = vpack.c.bf16 %v1548, %v1548
    %v1581 = vpack.c.bf16 %v1549, %v1549
    %v1582 = vpack.c.bf16 %v1550, %v1550
    %v1583 = vpack.c.bf16 %v1551, %v1551
    %v1584 = vpack.c.bf16 %v1552, %v1552
    %v1585 = vpack.c.bf16 %v1553, %v1553
    %v1586 = vpack.c.bf16 %v1554, %v1554
    %v1587 = vpack.c.bf16 %v1555, %v1555
    %v1588 = vpack.c.bf16 %v1556, %v1556
    %v1589 = vpack.c.bf16 %v1557, %v1557
    %v1590 = vpack.c.bf16 %v1558, %v1558
    %v1591 = vpack.c.bf16 %v1559, %v1559
    %v1592 = vmul.f32 %v1488, %v1496
    %v1593 = vmul.f32 %v1489, %v1497
    %v1594 = vmul.f32 %v1490, %v1498
    %v1595 = vmul.f32 %v1491, %v1499
    %v1596 = vmul.f32 %v1492, %v1500
    %v1597 = vmul.f32 %v1493, %v1501
    %v1598 = vmul.f32 %v1494, %v1502
    %v1599 = vmul.f32 %v1495, %v1503
    %v1600 = vmul.f32 %v1488, %v1504
    %v1601 = vmul.f32 %v1489, %v1505
    %v1602 = vmul.f32 %v1490, %v1506
    %v1603 = vmul.f32 %v1491, %v1507
    %v1604 = vmul.f32 %v1492, %v1508
    %v1605 = vmul.f32 %v1493, %v1509
    %v1606 = vmul.f32 %v1494, %v1510
    %v1607 = vmul.f32 %v1495, %v1511
    %v1608 = vmul.f32 %v1488, %v1512
    %v1609 = vmul.f32 %v1489, %v1513
    %v1610 = vmul.f32 %v1490, %v1514
    %v1611 = vmul.f32 %v1491, %v1515
    %v1612 = vmul.f32 %v1492, %v1516
    %v1613 = vmul.f32 %v1493, %v1517
    %v1614 = vmul.f32 %v1494, %v1518
    %v1615 = vmul.f32 %v1495, %v1519
    %v1616 = vmul.f32 %v1488, %v1520
    %v1617 = vmul.f32 %v1489, %v1521
    %v1618 = vmul.f32 %v1490, %v1522
    %v1619 = vmul.f32 %v1491, %v1523
    %v1620 = vmul.f32 %v1492, %v1524
    %v1621 = vmul.f32 %v1493, %v1525
    %v1622 = vmul.f32 %v1494, %v1526
    %v1623 = vmul.f32 %v1495, %v1527
    %v1624 = vpack.c.bf16 %v1592, %v1592
    %v1625 = vpack.c.bf16 %v1593, %v1593
    %v1626 = vpack.c.bf16 %v1594, %v1594
    %v1627 = vpack.c.bf16 %v1595, %v1595
    %v1628 = vpack.c.bf16 %v1596, %v1596
    %v1629 = vpack.c.bf16 %v1597, %v1597
    %v1630 = vpack.c.bf16 %v1598, %v1598
    %v1631 = vpack.c.bf16 %v1599, %v1599
    %v1632 = vpack.c.bf16 %v1600, %v1600
    %v1633 = vpack.c.bf16 %v1601, %v1601
    %v1634 = vpack.c.bf16 %v1602, %v1602
    %v1635 = vpack.c.bf16 %v1603, %v1603
    %v1636 = vpack.c.bf16 %v1604, %v1604
    %v1637 = vpack.c.bf16 %v1605, %v1605
    %v1638 = vpack.c.bf16 %v1606, %v1606
    %v1639 = vpack.c.bf16 %v1607, %v1607
    %v1640 = vpack.c.bf16 %v1608, %v1608
    %v1641 = vpack.c.bf16 %v1609, %v1609
    %v1642 = vpack.c.bf16 %v1610, %v1610
    %v1643 = vpack.c.bf16 %v1611, %v1611
    %v1644 = vpack.c.bf16 %v1612, %v1612
    %v1645 = vpack.c.bf16 %v1613, %v1613
    %v1646 = vpack.c.bf16 %v1614, %v1614
    %v1647 = vpack.c.bf16 %v1615, %v1615
    %v1648 = vpack.c.bf16 %v1616, %v1616
    %v1649 = vpack.c.bf16 %v1617, %v1617
    %v1650 = vpack.c.bf16 %v1618, %v1618
    %v1651 = vpack.c.bf16 %v1619, %v1619
    %v1652 = vpack.c.bf16 %v1620, %v1620
    %v1653 = vpack.c.bf16 %v1621, %v1621
    %v1654 = vpack.c.bf16 %v1622, %v1622
    %v1655 = vpack.c.bf16 %v1623, %v1623
    %v1656 = vld [vmem:[%s4] sm:$0xf]
    %v1657 = vld [vmem:[%s4 + $0x4] sm:$0xf]
    %v1658 = vld [vmem:[%s4 + $0x8] sm:$0xf]
    %v1659 = vld [vmem:[%s4 + $0xc] sm:$0xf]
    %v1660 = vld [vmem:[%s5] sm:$0xf]
    %v1661 = vld [vmem:[%s5 + $0x4] sm:$0xf]
    %v1662 = vld [vmem:[%s5 + $0x8] sm:$0xf]
    %v1663 = vld [vmem:[%s5 + $0xc] sm:$0xf]
    %v1696 = vunpack.c.l.b16 %v1624
    %v1697 = vunpack.c.l.b16 %v1625
    %v1698 = vunpack.c.l.b16 %v1626
    %v1699 = vunpack.c.l.b16 %v1627
    %v1700 = vunpack.c.l.b16 %v1628
    %v1701 = vunpack.c.l.b16 %v1629
    %v1702 = vunpack.c.l.b16 %v1630
    %v1703 = vunpack.c.l.b16 %v1631
    %v1704 = vunpack.c.l.b16 %v1632
    %v1705 = vunpack.c.l.b16 %v1633
    %v1706 = vunpack.c.l.b16 %v1634
    %v1707 = vunpack.c.l.b16 %v1635
    %v1708 = vunpack.c.l.b16 %v1636
    %v1709 = vunpack.c.l.b16 %v1637
    %v1710 = vunpack.c.l.b16 %v1638
    %v1711 = vunpack.c.l.b16 %v1639
    %v1712 = vunpack.c.l.b16 %v1640
    %v1713 = vunpack.c.l.b16 %v1641
    %v1714 = vunpack.c.l.b16 %v1642
    %v1715 = vunpack.c.l.b16 %v1643
    %v1716 = vunpack.c.l.b16 %v1644
    %v1717 = vunpack.c.l.b16 %v1645
    %v1718 = vunpack.c.l.b16 %v1646
    %v1719 = vunpack.c.l.b16 %v1647
    %v1720 = vunpack.c.l.b16 %v1648
    %v1721 = vunpack.c.l.b16 %v1649
    %v1722 = vunpack.c.l.b16 %v1650
    %v1723 = vunpack.c.l.b16 %v1651
    %v1724 = vunpack.c.l.b16 %v1652
    %v1725 = vunpack.c.l.b16 %v1653
    %v1726 = vunpack.c.l.b16 %v1654
    %v1727 = vunpack.c.l.b16 %v1655
    %v1728 = vpack.c.b16 %v1697, %v1696
    %v1729 = vpack.c.b16 %v1699, %v1698
    %v1730 = vpack.c.b16 %v1701, %v1700
    %v1731 = vpack.c.b16 %v1703, %v1702
    %v1732 = vpack.c.b16 %v1705, %v1704
    %v1733 = vpack.c.b16 %v1707, %v1706
    %v1734 = vpack.c.b16 %v1709, %v1708
    %v1735 = vpack.c.b16 %v1711, %v1710
    %v1736 = vpack.c.b16 %v1713, %v1712
    %v1737 = vpack.c.b16 %v1715, %v1714
    %v1738 = vpack.c.b16 %v1717, %v1716
    %v1739 = vpack.c.b16 %v1719, %v1718
    %v1740 = vpack.c.b16 %v1721, %v1720
    %v1741 = vpack.c.b16 %v1723, %v1722
    %v1742 = vpack.c.b16 %v1725, %v1724
    %v1743 = vpack.c.b16 %v1727, %v1726
    %v1748 = vunpack.c.l.b16 %v1660
    %v1749 = vunpack.c.l.b16 %v1661
    %v1750 = vunpack.c.l.b16 %v1662
    %v1751 = vunpack.c.l.b16 %v1663
    %v1752 = vpack.c.b16 %v1749, %v1748
    %v1753 = vpack.c.b16 %v1751, %v1750
    %v1757 = vsel %vm90, %v1728, 0
    %v1760 = vsel %vm90, %v1729, 0
    %v1763 = vsel %vm90, %v1730, 0
    %v1766 = vsel %vm90, %v1731, 0
    %v1769 = vsel %vm90, %v1732, 0
    %v1772 = vsel %vm90, %v1733, 0
    %v1775 = vsel %vm90, %v1734, 0
    %v1778 = vsel %vm90, %v1735, 0
    %v1781 = vsel %vm90, %v1736, 0
    %v1784 = vsel %vm90, %v1737, 0
    %v1787 = vsel %vm90, %v1738, 0
    %v1790 = vsel %vm90, %v1739, 0
    %v1793 = vsel %vm90, %v1740, 0
    %v1796 = vsel %vm90, %v1741, 0
    %v1799 = vsel %vm90, %v1742, 0
    %v1802 = vsel %vm90, %v1743, 0
    %1804 = vmatpush.bf16.msra.mxu0 0
    %1805 = vmatpush.bf16.msra.mxu0 0
    %1806 = vmatpush.bf16.msra.mxu0 0
    %1807 = vmatpush.bf16.msra.mxu0 0
    %1808 = vmatpush.bf16.msra.mxu0 0
    %1809 = vmatpush.bf16.msra.mxu0 0
    %1810 = vmatpush.bf16.msra.mxu0 %v1753
    %1811 = vmatpush.bf16.msra.mxu0 %v1752
    %1812 = vmatmul.bf16.gmra.mxu0 %v1757
    %v1813 = vpop.f32.mrf.mxu0
    %v1814 = vadd.f32 0.0, %v1813
    %v1815 = vpop.f32.mrf.mxu0
    %v1816 = vadd.f32 0.0, %v1815
    %1817 = vmatmul.bf16.gmra.mxu0 %v1760
    %v1818 = vpop.f32.mrf.mxu0
    %v1819 = vadd.f32 0.0, %v1818
    %v1820 = vpop.f32.mrf.mxu0
    %v1821 = vadd.f32 0.0, %v1820
    %1822 = vmatmul.bf16.gmra.mxu0 %v1763
    %v1823 = vpop.f32.mrf.mxu0
    %v1824 = vadd.f32 0.0, %v1823
    %v1825 = vpop.f32.mrf.mxu0
    %v1826 = vadd.f32 0.0, %v1825
    %1827 = vmatmul.bf16.gmra.mxu0 %v1766
    %v1828 = vpop.f32.mrf.mxu0
    %v1829 = vadd.f32 0.0, %v1828
    %v1830 = vpop.f32.mrf.mxu0
    %v1831 = vadd.f32 0.0, %v1830
    %1832 = vmatmul.bf16.gmra.mxu0 %v1769
    %v1833 = vpop.f32.mrf.mxu0
    %v1834 = vadd.f32 0.0, %v1833
    %v1835 = vpop.f32.mrf.mxu0
    %v1836 = vadd.f32 0.0, %v1835
    %1837 = vmatmul.bf16.gmra.mxu0 %v1772
    %v1838 = vpop.f32.mrf.mxu0
    %v1839 = vadd.f32 0.0, %v1838
    %v1840 = vpop.f32.mrf.mxu0
    %v1841 = vadd.f32 0.0, %v1840
    %1842 = vmatmul.bf16.gmra.mxu0 %v1775
    %v1843 = vpop.f32.mrf.mxu0
    %v1844 = vadd.f32 0.0, %v1843
    %v1845 = vpop.f32.mrf.mxu0
    %v1846 = vadd.f32 0.0, %v1845
    %1847 = vmatmul.bf16.gmra.mxu0 %v1778
    %v1848 = vpop.f32.mrf.mxu0
    %v1849 = vadd.f32 0.0, %v1848
    %v1850 = vpop.f32.mrf.mxu0
    %v1851 = vadd.f32 0.0, %v1850
    %1852 = vmatmul.bf16.gmra.mxu0 %v1781
    %v1853 = vpop.f32.mrf.mxu0
    %v1854 = vadd.f32 0.0, %v1853
    %v1855 = vpop.f32.mrf.mxu0
    %v1856 = vadd.f32 0.0, %v1855
    %1857 = vmatmul.bf16.gmra.mxu0 %v1784
    %v1858 = vpop.f32.mrf.mxu0
    %v1859 = vadd.f32 0.0, %v1858
    %v1860 = vpop.f32.mrf.mxu0
    %v1861 = vadd.f32 0.0, %v1860
    %1862 = vmatmul.bf16.gmra.mxu0 %v1787
    %v1863 = vpop.f32.mrf.mxu0
    %v1864 = vadd.f32 0.0, %v1863
    %v1865 = vpop.f32.mrf.mxu0
    %v1866 = vadd.f32 0.0, %v1865
    %1867 = vmatmul.bf16.gmra.mxu0 %v1790
    %v1868 = vpop.f32.mrf.mxu0
    %v1869 = vadd.f32 0.0, %v1868
    %v1870 = vpop.f32.mrf.mxu0
    %v1871 = vadd.f32 0.0, %v1870
    %1872 = vmatmul.bf16.gmra.mxu0 %v1793
    %v1873 = vpop.f32.mrf.mxu0
    %v1874 = vadd.f32 0.0, %v1873
    %v1875 = vpop.f32.mrf.mxu0
    %v1876 = vadd.f32 0.0, %v1875
    %1877 = vmatmul.bf16.gmra.mxu0 %v1796
    %v1878 = vpop.f32.mrf.mxu0
    %v1879 = vadd.f32 0.0, %v1878
    %v1880 = vpop.f32.mrf.mxu0
    %v1881 = vadd.f32 0.0, %v1880
    %1882 = vmatmul.bf16.gmra.mxu0 %v1799
    %v1883 = vpop.f32.mrf.mxu0
    %v1884 = vadd.f32 0.0, %v1883
    %v1885 = vpop.f32.mrf.mxu0
    %v1886 = vadd.f32 0.0, %v1885
    %1887 = vmatmul.bf16.gmra.mxu0 %v1802
    %v1888 = vpop.f32.mrf.mxu0
    %v1889 = vadd.f32 0.0, %v1888
    %v1890 = vpop.f32.mrf.mxu0
    %v1891 = vadd.f32 0.0, %v1890
    %1892 = vdwg.mxu0
    %v1925 = vunpack.c.l.b16 %v1560
    %v1926 = vunpack.c.l.b16 %v1561
    %v1927 = vunpack.c.l.b16 %v1562
    %v1928 = vunpack.c.l.b16 %v1563
    %v1929 = vunpack.c.l.b16 %v1564
    %v1930 = vunpack.c.l.b16 %v1565
    %v1931 = vunpack.c.l.b16 %v1566
    %v1932 = vunpack.c.l.b16 %v1567
    %v1933 = vunpack.c.l.b16 %v1568
    %v1934 = vunpack.c.l.b16 %v1569
    %v1935 = vunpack.c.l.b16 %v1570
    %v1936 = vunpack.c.l.b16 %v1571
    %v1937 = vunpack.c.l.b16 %v1572
    %v1938 = vunpack.c.l.b16 %v1573
    %v1939 = vunpack.c.l.b16 %v1574
    %v1940 = vunpack.c.l.b16 %v1575
    %v1941 = vunpack.c.l.b16 %v1576
    %v1942 = vunpack.c.l.b16 %v1577
    %v1943 = vunpack.c.l.b16 %v1578
    %v1944 = vunpack.c.l.b16 %v1579
    %v1945 = vunpack.c.l.b16 %v1580
    %v1946 = vunpack.c.l.b16 %v1581
    %v1947 = vunpack.c.l.b16 %v1582
    %v1948 = vunpack.c.l.b16 %v1583
    %v1949 = vunpack.c.l.b16 %v1584
    %v1950 = vunpack.c.l.b16 %v1585
    %v1951 = vunpack.c.l.b16 %v1586
    %v1952 = vunpack.c.l.b16 %v1587
    %v1953 = vunpack.c.l.b16 %v1588
    %v1954 = vunpack.c.l.b16 %v1589
    %v1955 = vunpack.c.l.b16 %v1590
    %v1956 = vunpack.c.l.b16 %v1591
    %v1957 = vpack.c.b16 %v1926, %v1925
    %v1958 = vpack.c.b16 %v1928, %v1927
    %v1959 = vpack.c.b16 %v1930, %v1929
    %v1960 = vpack.c.b16 %v1932, %v1931
    %v1961 = vpack.c.b16 %v1934, %v1933
    %v1962 = vpack.c.b16 %v1936, %v1935
    %v1963 = vpack.c.b16 %v1938, %v1937
    %v1964 = vpack.c.b16 %v1940, %v1939
    %v1965 = vpack.c.b16 %v1942, %v1941
    %v1966 = vpack.c.b16 %v1944, %v1943
    %v1967 = vpack.c.b16 %v1946, %v1945
    %v1968 = vpack.c.b16 %v1948, %v1947
    %v1969 = vpack.c.b16 %v1950, %v1949
    %v1970 = vpack.c.b16 %v1952, %v1951
    %v1971 = vpack.c.b16 %v1954, %v1953
    %v1972 = vpack.c.b16 %v1956, %v1955
    %v1977 = vunpack.c.l.b16 %v1656
    %v1978 = vunpack.c.l.b16 %v1657
    %v1979 = vunpack.c.l.b16 %v1658
    %v1980 = vunpack.c.l.b16 %v1659
    %v1981 = vpack.c.b16 %v1978, %v1977
    %v1982 = vpack.c.b16 %v1980, %v1979
    %v1986 = vsel %vm90, %v1957, 0
    %v1989 = vsel %vm90, %v1958, 0
    %v1992 = vsel %vm90, %v1959, 0
    %v1995 = vsel %vm90, %v1960, 0
    %v1998 = vsel %vm90, %v1961, 0
    %v2001 = vsel %vm90, %v1962, 0
    %v2004 = vsel %vm90, %v1963, 0
    %v2007 = vsel %vm90, %v1964, 0
    %v2010 = vsel %vm90, %v1965, 0
    %v2013 = vsel %vm90, %v1966, 0
    %v2016 = vsel %vm90, %v1967, 0
    %v2019 = vsel %vm90, %v1968, 0
    %v2022 = vsel %vm90, %v1969, 0
    %v2025 = vsel %vm90, %v1970, 0
    %v2028 = vsel %vm90, %v1971, 0
    %v2031 = vsel %vm90, %v1972, 0
    %2033 = vmatpush.bf16.msra.mxu0 0
    %2034 = vmatpush.bf16.msra.mxu0 0
    %2035 = vmatpush.bf16.msra.mxu0 0
    %2036 = vmatpush.bf16.msra.mxu0 0
    %2037 = vmatpush.bf16.msra.mxu0 0
    %2038 = vmatpush.bf16.msra.mxu0 0
    %2039 = vmatpush.bf16.msra.mxu0 %v1982
    %2040 = vmatpush.bf16.msra.mxu0 %v1981
    %2041 = vmatmul.bf16.gmra.mxu0 %v1986
    %v2042 = vpop.f32.mrf.mxu0
    %v2043 = vadd.f32 %v1814, %v2042
    %v2044 = vpop.f32.mrf.mxu0
    %v2045 = vadd.f32 %v1816, %v2044
    %2046 = vmatmul.bf16.gmra.mxu0 %v1989
    %v2047 = vpop.f32.mrf.mxu0
    %v2048 = vadd.f32 %v1819, %v2047
    %v2049 = vpop.f32.mrf.mxu0
    %v2050 = vadd.f32 %v1821, %v2049
    %2051 = vmatmul.bf16.gmra.mxu0 %v1992
    %v2052 = vpop.f32.mrf.mxu0
    %v2053 = vadd.f32 %v1824, %v2052
    %v2054 = vpop.f32.mrf.mxu0
    %v2055 = vadd.f32 %v1826, %v2054
    %2056 = vmatmul.bf16.gmra.mxu0 %v1995
    %v2057 = vpop.f32.mrf.mxu0
    %v2058 = vadd.f32 %v1829, %v2057
    %v2059 = vpop.f32.mrf.mxu0
    %v2060 = vadd.f32 %v1831, %v2059
    %2061 = vmatmul.bf16.gmra.mxu0 %v1998
    %v2062 = vpop.f32.mrf.mxu0
    %v2063 = vadd.f32 %v1834, %v2062
    %v2064 = vpop.f32.mrf.mxu0
    %v2065 = vadd.f32 %v1836, %v2064
    %2066 = vmatmul.bf16.gmra.mxu0 %v2001
    %v2067 = vpop.f32.mrf.mxu0
    %v2068 = vadd.f32 %v1839, %v2067
    %v2069 = vpop.f32.mrf.mxu0
    %v2070 = vadd.f32 %v1841, %v2069
    %2071 = vmatmul.bf16.gmra.mxu0 %v2004
    %v2072 = vpop.f32.mrf.mxu0
    %v2073 = vadd.f32 %v1844, %v2072
    %v2074 = vpop.f32.mrf.mxu0
    %v2075 = vadd.f32 %v1846, %v2074
    %2076 = vmatmul.bf16.gmra.mxu0 %v2007
    %v2077 = vpop.f32.mrf.mxu0
    %v2078 = vadd.f32 %v1849, %v2077
    %v2079 = vpop.f32.mrf.mxu0
    %v2080 = vadd.f32 %v1851, %v2079
    %2081 = vmatmul.bf16.gmra.mxu0 %v2010
    %v2082 = vpop.f32.mrf.mxu0
    %v2083 = vadd.f32 %v1854, %v2082
    %v2084 = vpop.f32.mrf.mxu0
    %v2085 = vadd.f32 %v1856, %v2084
    %2086 = vmatmul.bf16.gmra.mxu0 %v2013
    %v2087 = vpop.f32.mrf.mxu0
    %v2088 = vadd.f32 %v1859, %v2087
    %v2089 = vpop.f32.mrf.mxu0
    %v2090 = vadd.f32 %v1861, %v2089
    %2091 = vmatmul.bf16.gmra.mxu0 %v2016
    %v2092 = vpop.f32.mrf.mxu0
    %v2093 = vadd.f32 %v1864, %v2092
    %v2094 = vpop.f32.mrf.mxu0
    %v2095 = vadd.f32 %v1866, %v2094
    %2096 = vmatmul.bf16.gmra.mxu0 %v2019
    %v2097 = vpop.f32.mrf.mxu0
    %v2098 = vadd.f32 %v1869, %v2097
    %v2099 = vpop.f32.mrf.mxu0
    %v2100 = vadd.f32 %v1871, %v2099
    %2101 = vmatmul.bf16.gmra.mxu0 %v2022
    %v2102 = vpop.f32.mrf.mxu0
    %v2103 = vadd.f32 %v1874, %v2102
    %v2104 = vpop.f32.mrf.mxu0
    %v2105 = vadd.f32 %v1876, %v2104
    %2106 = vmatmul.bf16.gmra.mxu0 %v2025
    %v2107 = vpop.f32.mrf.mxu0
    %v2108 = vadd.f32 %v1879, %v2107
    %v2109 = vpop.f32.mrf.mxu0
    %v2110 = vadd.f32 %v1881, %v2109
    %2111 = vmatmul.bf16.gmra.mxu0 %v2028
    %v2112 = vpop.f32.mrf.mxu0
    %v2113 = vadd.f32 %v1884, %v2112
    %v2114 = vpop.f32.mrf.mxu0
    %v2115 = vadd.f32 %v1886, %v2114
    %2116 = vmatmul.bf16.gmra.mxu0 %v2031
    %v2117 = vpop.f32.mrf.mxu0
    %v2118 = vadd.f32 %v1889, %v2117
    %v2119 = vpop.f32.mrf.mxu0
    %v2120 = vadd.f32 %v1891, %v2119
    %2121 = vdwg.mxu0
    %v2122 = vld [vmem:[%s6] sm:$0x1]
    %v2124 = vperm.slane %v2122, 0
    %v2126 = vadd.f32 %v2043, %v2124
    %v2127 = vadd.f32 %v2045, %v2124
    %v2128 = vadd.f32 %v2048, %v2124
    %v2129 = vadd.f32 %v2050, %v2124
    %v2130 = vadd.f32 %v2053, %v2124
    %v2131 = vadd.f32 %v2055, %v2124
    %v2132 = vadd.f32 %v2058, %v2124
    %v2133 = vadd.f32 %v2060, %v2124
    %v2134 = vadd.f32 %v2063, %v2124
    %v2135 = vadd.f32 %v2065, %v2124
    %v2136 = vadd.f32 %v2068, %v2124
    %v2137 = vadd.f32 %v2070, %v2124
    %v2138 = vadd.f32 %v2073, %v2124
    %v2139 = vadd.f32 %v2075, %v2124
    %v2140 = vadd.f32 %v2078, %v2124
    %v2141 = vadd.f32 %v2080, %v2124
    %v2142 = vadd.f32 %v2083, %v2124
    %v2143 = vadd.f32 %v2085, %v2124
    %v2144 = vadd.f32 %v2088, %v2124
    %v2145 = vadd.f32 %v2090, %v2124
    %v2146 = vadd.f32 %v2093, %v2124
    %v2147 = vadd.f32 %v2095, %v2124
    %v2148 = vadd.f32 %v2098, %v2124
    %v2149 = vadd.f32 %v2100, %v2124
    %v2150 = vadd.f32 %v2103, %v2124
    %v2151 = vadd.f32 %v2105, %v2124
    %v2152 = vadd.f32 %v2108, %v2124
    %v2153 = vadd.f32 %v2110, %v2124
    %v2154 = vadd.f32 %v2113, %v2124
    %v2155 = vadd.f32 %v2115, %v2124
    %v2156 = vadd.f32 %v2118, %v2124
    %v2157 = vadd.f32 %v2120, %v2124
    %v2158 = vmax.f32 %v2126, 0.0
    %v2159 = vmax.f32 %v2127, 0.0
    %v2160 = vmax.f32 %v2128, 0.0
    %v2161 = vmax.f32 %v2129, 0.0
    %v2162 = vmax.f32 %v2130, 0.0
    %v2163 = vmax.f32 %v2131, 0.0
    %v2164 = vmax.f32 %v2132, 0.0
    %v2165 = vmax.f32 %v2133, 0.0
    %v2166 = vmax.f32 %v2134, 0.0
    %v2167 = vmax.f32 %v2135, 0.0
    %v2168 = vmax.f32 %v2136, 0.0
    %v2169 = vmax.f32 %v2137, 0.0
    %v2170 = vmax.f32 %v2138, 0.0
    %v2171 = vmax.f32 %v2139, 0.0
    %v2172 = vmax.f32 %v2140, 0.0
    %v2173 = vmax.f32 %v2141, 0.0
    %v2174 = vmax.f32 %v2142, 0.0
    %v2175 = vmax.f32 %v2143, 0.0
    %v2176 = vmax.f32 %v2144, 0.0
    %v2177 = vmax.f32 %v2145, 0.0
    %v2178 = vmax.f32 %v2146, 0.0
    %v2179 = vmax.f32 %v2147, 0.0
    %v2180 = vmax.f32 %v2148, 0.0
    %v2181 = vmax.f32 %v2149, 0.0
    %v2182 = vmax.f32 %v2150, 0.0
    %v2183 = vmax.f32 %v2151, 0.0
    %v2184 = vmax.f32 %v2152, 0.0
    %v2185 = vmax.f32 %v2153, 0.0
    %v2186 = vmax.f32 %v2154, 0.0
    %v2187 = vmax.f32 %v2155, 0.0
    %v2188 = vmax.f32 %v2156, 0.0
    %v2189 = vmax.f32 %v2157, 0.0
    %v2190 = vsel %vm90, %v2158, 0.0
    %v2191 = vsel %vm90, %v2159, 0.0
    %v2192 = vadd.f32 %v2190, %v2191
    %v2193 = vsel %vm90, %v2160, 0.0
    %v2194 = vadd.f32 %v2192, %v2193
    %v2195 = vsel %vm90, %v2161, 0.0
    %v2196 = vadd.f32 %v2194, %v2195
    %v2197 = vrot.slane %v2196, 4
    %v2198 = vadd.f32 %v2196, %v2197
    %v2199 = vrot.slane %v2198, 2
    %v2200 = vadd.f32 %v2198, %v2199
    %v2201 = vrot.slane %v2200, 1
    %v2202 = vadd.f32 %v2200, %v2201
    %v2203 = vsel %vm90, %v2162, 0.0
    %v2204 = vsel %vm90, %v2163, 0.0
    %v2205 = vadd.f32 %v2203, %v2204
    %v2206 = vsel %vm90, %v2164, 0.0
    %v2207 = vadd.f32 %v2205, %v2206
    %v2208 = vsel %vm90, %v2165, 0.0
    %v2209 = vadd.f32 %v2207, %v2208
    %v2210 = vrot.slane %v2209, 4
    %v2211 = vadd.f32 %v2209, %v2210
    %v2212 = vrot.slane %v2211, 2
    %v2213 = vadd.f32 %v2211, %v2212
    %v2214 = vrot.slane %v2213, 1
    %v2215 = vadd.f32 %v2213, %v2214
    %v2216 = vsel %vm90, %v2166, 0.0
    %v2217 = vsel %vm90, %v2167, 0.0
    %v2218 = vadd.f32 %v2216, %v2217
    %v2219 = vsel %vm90, %v2168, 0.0
    %v2220 = vadd.f32 %v2218, %v2219
    %v2221 = vsel %vm90, %v2169, 0.0
    %v2222 = vadd.f32 %v2220, %v2221
    %v2223 = vrot.slane %v2222, 4
    %v2224 = vadd.f32 %v2222, %v2223
    %v2225 = vrot.slane %v2224, 2
    %v2226 = vadd.f32 %v2224, %v2225
    %v2227 = vrot.slane %v2226, 1
    %v2228 = vadd.f32 %v2226, %v2227
    %v2229 = vsel %vm90, %v2170, 0.0
    %v2230 = vsel %vm90, %v2171, 0.0
    %v2231 = vadd.f32 %v2229, %v2230
    %v2232 = vsel %vm90, %v2172, 0.0
    %v2233 = vadd.f32 %v2231, %v2232
    %v2234 = vsel %vm90, %v2173, 0.0
    %v2235 = vadd.f32 %v2233, %v2234
    %v2236 = vrot.slane %v2235, 4
    %v2237 = vadd.f32 %v2235, %v2236
    %v2238 = vrot.slane %v2237, 2
    %v2239 = vadd.f32 %v2237, %v2238
    %v2240 = vrot.slane %v2239, 1
    %v2241 = vadd.f32 %v2239, %v2240
    %v2242 = vsel %vm90, %v2174, 0.0
    %v2243 = vsel %vm90, %v2175, 0.0
    %v2244 = vadd.f32 %v2242, %v2243
    %v2245 = vsel %vm90, %v2176, 0.0
    %v2246 = vadd.f32 %v2244, %v2245
    %v2247 = vsel %vm90, %v2177, 0.0
    %v2248 = vadd.f32 %v2246, %v2247
    %v2249 = vrot.slane %v2248, 4
    %v2250 = vadd.f32 %v2248, %v2249
    %v2251 = vrot.slane %v2250, 2
    %v2252 = vadd.f32 %v2250, %v2251
    %v2253 = vrot.slane %v2252, 1
    %v2254 = vadd.f32 %v2252, %v2253
    %v2255 = vsel %vm90, %v2178, 0.0
    %v2256 = vsel %vm90, %v2179, 0.0
    %v2257 = vadd.f32 %v2255, %v2256
    %v2258 = vsel %vm90, %v2180, 0.0
    %v2259 = vadd.f32 %v2257, %v2258
    %v2260 = vsel %vm90, %v2181, 0.0
    %v2261 = vadd.f32 %v2259, %v2260
    %v2262 = vrot.slane %v2261, 4
    %v2263 = vadd.f32 %v2261, %v2262
    %v2264 = vrot.slane %v2263, 2
    %v2265 = vadd.f32 %v2263, %v2264
    %v2266 = vrot.slane %v2265, 1
    %v2267 = vadd.f32 %v2265, %v2266
    %v2268 = vsel %vm90, %v2182, 0.0
    %v2269 = vsel %vm90, %v2183, 0.0
    %v2270 = vadd.f32 %v2268, %v2269
    %v2271 = vsel %vm90, %v2184, 0.0
    %v2272 = vadd.f32 %v2270, %v2271
    %v2273 = vsel %vm90, %v2185, 0.0
    %v2274 = vadd.f32 %v2272, %v2273
    %v2275 = vrot.slane %v2274, 4
    %v2276 = vadd.f32 %v2274, %v2275
    %v2277 = vrot.slane %v2276, 2
    %v2278 = vadd.f32 %v2276, %v2277
    %v2279 = vrot.slane %v2278, 1
    %v2280 = vadd.f32 %v2278, %v2279
    %v2281 = vsel %vm90, %v2186, 0.0
    %v2282 = vsel %vm90, %v2187, 0.0
    %v2283 = vadd.f32 %v2281, %v2282
    %v2284 = vsel %vm90, %v2188, 0.0
    %v2285 = vadd.f32 %v2283, %v2284
    %v2286 = vsel %vm90, %v2189, 0.0
    %v2287 = vadd.f32 %v2285, %v2286
    %v2288 = vrot.slane %v2287, 4
    %v2289 = vadd.f32 %v2287, %v2288
    %v2290 = vrot.slane %v2289, 2
    %v2291 = vadd.f32 %v2289, %v2290
    %v2292 = vrot.slane %v2291, 1
    %v2293 = vadd.f32 %v2291, %v2292
    %v2294 = vrcp.pop 32.0
    %v2295 = vmul.f32 32.0, %v2294
    %v2296 = vsub.f32 1.0, %v2295
    %v2297 = vmul.f32 %v2294, %v2296
    %v2298 = vadd.f32 %v2294, %v2297
    %vm2299 = vweird.f32 %v2294
    %v2300 = vsel %vm2299, %v2294, %v2298
    %v2301 = vmul.f32 %v2202, %v2300
    %v2302 = vmul.f32 %v2215, %v2300
    %v2303 = vmul.f32 %v2228, %v2300
    %v2304 = vmul.f32 %v2241, %v2300
    %v2305 = vmul.f32 %v2254, %v2300
    %v2306 = vmul.f32 %v2267, %v2300
    %v2307 = vmul.f32 %v2280, %v2300
    %v2308 = vmul.f32 %v2293, %v2300
    %v2309 = vsel %vm90, %v2158, -inf
    %v2310 = vsel %vm90, %v2159, -inf
    %v2311 = vmax.f32 %v2309, %v2310
    %v2312 = vsel %vm90, %v2160, -inf
    %v2313 = vmax.f32 %v2311, %v2312
    %v2314 = vsel %vm90, %v2161, -inf
    %v2315 = vmax.f32 %v2313, %v2314
    %v2316 = vrot.slane %v2315, 4
    %v2317 = vmax.f32 %v2315, %v2316
    %v2318 = vrot.slane %v2317, 2
    %v2319 = vmax.f32 %v2317, %v2318
    %v2320 = vrot.slane %v2319, 1
    %v2321 = vmax.f32 %v2319, %v2320
    %v2322 = vsel %vm90, %v2162, -inf
    %v2323 = vsel %vm90, %v2163, -inf
    %v2324 = vmax.f32 %v2322, %v2323
    %v2325 = vsel %vm90, %v2164, -inf
    %v2326 = vmax.f32 %v2324, %v2325
    %v2327 = vsel %vm90, %v2165, -inf
    %v2328 = vmax.f32 %v2326, %v2327
    %v2329 = vrot.slane %v2328, 4
    %v2330 = vmax.f32 %v2328, %v2329
    %v2331 = vrot.slane %v2330, 2
    %v2332 = vmax.f32 %v2330, %v2331
    %v2333 = vrot.slane %v2332, 1
    %v2334 = vmax.f32 %v2332, %v2333
    %v2335 = vsel %vm90, %v2166, -inf
    %v2336 = vsel %vm90, %v2167, -inf
    %v2337 = vmax.f32 %v2335, %v2336
    %v2338 = vsel %vm90, %v2168, -inf
    %v2339 = vmax.f32 %v2337, %v2338
    %v2340 = vsel %vm90, %v2169, -inf
    %v2341 = vmax.f32 %v2339, %v2340
    %v2342 = vrot.slane %v2341, 4
    %v2343 = vmax.f32 %v2341, %v2342
    %v2344 = vrot.slane %v2343, 2
    %v2345 = vmax.f32 %v2343, %v2344
    %v2346 = vrot.slane %v2345, 1
    %v2347 = vmax.f32 %v2345, %v2346
    %v2348 = vsel %vm90, %v2170, -inf
    %v2349 = vsel %vm90, %v2171, -inf
    %v2350 = vmax.f32 %v2348, %v2349
    %v2351 = vsel %vm90, %v2172, -inf
    %v2352 = vmax.f32 %v2350, %v2351
    %v2353 = vsel %vm90, %v2173, -inf
    %v2354 = vmax.f32 %v2352, %v2353
    %v2355 = vrot.slane %v2354, 4
    %v2356 = vmax.f32 %v2354, %v2355
    %v2357 = vrot.slane %v2356, 2
    %v2358 = vmax.f32 %v2356, %v2357
    %v2359 = vrot.slane %v2358, 1
    %v2360 = vmax.f32 %v2358, %v2359
    %v2361 = vsel %vm90, %v2174, -inf
    %v2362 = vsel %vm90, %v2175, -inf
    %v2363 = vmax.f32 %v2361, %v2362
    %v2364 = vsel %vm90, %v2176, -inf
    %v2365 = vmax.f32 %v2363, %v2364
    %v2366 = vsel %vm90, %v2177, -inf
    %v2367 = vmax.f32 %v2365, %v2366
    %v2368 = vrot.slane %v2367, 4
    %v2369 = vmax.f32 %v2367, %v2368
    %v2370 = vrot.slane %v2369, 2
    %v2371 = vmax.f32 %v2369, %v2370
    %v2372 = vrot.slane %v2371, 1
    %v2373 = vmax.f32 %v2371, %v2372
    %v2374 = vsel %vm90, %v2178, -inf
    %v2375 = vsel %vm90, %v2179, -inf
    %v2376 = vmax.f32 %v2374, %v2375
    %v2377 = vsel %vm90, %v2180, -inf
    %v2378 = vmax.f32 %v2376, %v2377
    %v2379 = vsel %vm90, %v2181, -inf
    %v2380 = vmax.f32 %v2378, %v2379
    %v2381 = vrot.slane %v2380, 4
    %v2382 = vmax.f32 %v2380, %v2381
    %v2383 = vrot.slane %v2382, 2
    %v2384 = vmax.f32 %v2382, %v2383
    %v2385 = vrot.slane %v2384, 1
    %v2386 = vmax.f32 %v2384, %v2385
    %v2387 = vsel %vm90, %v2182, -inf
    %v2388 = vsel %vm90, %v2183, -inf
    %v2389 = vmax.f32 %v2387, %v2388
    %v2390 = vsel %vm90, %v2184, -inf
    %v2391 = vmax.f32 %v2389, %v2390
    %v2392 = vsel %vm90, %v2185, -inf
    %v2393 = vmax.f32 %v2391, %v2392
    %v2394 = vrot.slane %v2393, 4
    %v2395 = vmax.f32 %v2393, %v2394
    %v2396 = vrot.slane %v2395, 2
    %v2397 = vmax.f32 %v2395, %v2396
    %v2398 = vrot.slane %v2397, 1
    %v2399 = vmax.f32 %v2397, %v2398
    %v2400 = vsel %vm90, %v2186, -inf
    %v2401 = vsel %vm90, %v2187, -inf
    %v2402 = vmax.f32 %v2400, %v2401
    %v2403 = vsel %vm90, %v2188, -inf
    %v2404 = vmax.f32 %v2402, %v2403
    %v2405 = vsel %vm90, %v2189, -inf
    %v2406 = vmax.f32 %v2404, %v2405
    %v2407 = vrot.slane %v2406, 4
    %v2408 = vmax.f32 %v2406, %v2407
    %v2409 = vrot.slane %v2408, 2
    %v2410 = vmax.f32 %v2408, %v2409
    %v2411 = vrot.slane %v2410, 1
    %v2412 = vmax.f32 %v2410, %v2411
    %vm2413 = vcmask 1040384
    %v2414 = vsel %vm2413, %v2301, %v2321
    %v2415 = vsel %vm2413, %v2302, %v2334
    %v2416 = vsel %vm2413, %v2303, %v2347
    %v2417 = vsel %vm2413, %v2304, %v2360
    %v2418 = vsel %vm2413, %v2305, %v2373
    %v2419 = vsel %vm2413, %v2306, %v2386
    %v2420 = vsel %vm2413, %v2307, %v2399
    %v2421 = vsel %vm2413, %v2308, %v2412
    %vm2422 = vcmask 254976
    %2423 = vst.msk [vmem:[%s8] sm:$0x3] %vm2422, %v2414
    %2424 = vst.msk [vmem:[%s8 + $0x2] sm:$0x3] %vm2422, %v2415
    %2425 = vst.msk [vmem:[%s8 + $0x4] sm:$0x3] %vm2422, %v2416
    %2426 = vst.msk [vmem:[%s8 + $0x6] sm:$0x3] %vm2422, %v2417
    %2427 = vst.msk [vmem:[%s8 + $0x8] sm:$0x3] %vm2422, %v2418
    %2428 = vst.msk [vmem:[%s8 + $0xa] sm:$0x3] %vm2422, %v2419
    %2429 = vst.msk [vmem:[%s8 + $0xc] sm:$0x3] %vm2422, %v2420
    %2430 = vst.msk [vmem:[%s8 + $0xe] sm:$0x3] %vm2422, %v2421
    // Predicated region
    $region30: #{confusion_forward.1} parent=1 // pred_check
      _
    $region31: #{confusion_forward.1} parent=1 // pred_check_branch
      %2432 = sbr.rel (0) target = $region33
    $region32: #{confusion_forward.1} parent=1 // pred_region
      %2434 = vsyncadd [#allocation3], 0
      %s2435 = sshll.u32 [#allocation2], 4
      %s2436 = int_to_ptr.vmem [resolvable:$true] %s2435
      %s2437 = sshll.u32 %s7, 4
      %s2438 = int_to_ptr.hbm [resolvable:$true] %s2437
      %2443 = dma.vmem_to_hbm [thread:$0]  %s2436, 2048, %s2438, [#allocation3], 64, 64, 4
    $region33: #{confusion_forward.1} parent=1 // pred_fallthru
      _
    // Predicated region
    $region34: #{confusion_forward.1} parent=1 // pred_check
      _
    $region35: #{confusion_forward.1} parent=1 // pred_check_branch
      %2445 = sbr.rel (0) target = $region37
    $region36: #{confusion_forward.1} parent=1 // pred_region
      _
    $region37: #{confusion_forward.1} parent=1 // pred_fallthru
      _
    // Predicated region
    $region38: #{confusion_forward.1} parent=1 // pred_check
      _
    $region39: #{confusion_forward.1} parent=1 // pred_check_branch
      %2447 = sbr.rel (0) target = $region41
    $region40: #{confusion_forward.1} parent=1 // pred_region
      %2449 = dma.done [#allocation3], 2048
    $region41: #{confusion_forward.1} parent=1 // pred_fallthru
      _
    // Predicated region
    $region42: #{confusion_forward.1} parent=1 // pred_check
      _
    $region43: #{confusion_forward.1} parent=1 // pred_check_branch
      %2451 = sbr.rel (0) target = $region45
    $region44: #{confusion_forward.1} parent=1 // pred_region
      _
    $region45: #{confusion_forward.1} parent=1 // pred_fallthru
      _
    %2452 = vsyncpa [#allocation3], 1

</llo_original>
